<compile_context>
chip_gen: v7x
topology: tpu7x:2x2x1
jax: 0.10.0
libtpu: 0.0.40
codegen_flags: <defaults>
</compile_context>

<pallas_src>
import functools

import jax
import jax.numpy as jnp
from jax.experimental import pallas as pl
from jax.experimental.pallas import tpu as pltpu


# ----------------------------------------------------------------------------
# Fused kernel: [LSTM layer_0 ... layer_{L-1}] -> FC, all in VMEM / vregs.
# Gate column order inside the kernel is [i, f, o | g] (permuted in wrapper).
# ----------------------------------------------------------------------------
def _fused_rnn_kernel(*refs, num_layers, seq_len, batch_tile, hidden,
                      num_classes):
    S, B, H, C = seq_len, batch_tile, hidden, num_classes
    bf16 = jnp.bfloat16

    x_ref = refs[0]                                        # (S, B, I)   f32
    layer_refs = [tuple(refs[1 + 3 * l: 4 + 3 * l]) for l in range(num_layers)]
    wfc_ref = refs[1 + 3 * num_layers]                     # (S*H, C)    bf16
    bfc_ref = refs[2 + 3 * num_layers]                     # (1, C)      f32
    out_ref = refs[3 + 3 * num_layers]                     # (B, C)      f32

    # Load weights / biases exactly once (kernel is tiny; everything resident).
    wih = [r[0][...] for r in layer_refs]                  # (in, 4H) bf16
    whh = [r[1][...] for r in layer_refs]                  # (H, 4H)  bf16
    b_row = [r[2][...] for r in layer_refs]                # (1, 4H)  f32

    # Hoisted layer-0 input projection for the whole sequence (off the critical
    # path): one (S*B, I) @ (I, 4H) bf16 matmul, bias broadcast folded in once.
    x = x_ref[...].reshape(S * B, x_ref.shape[-1]).astype(bf16)
    gx0 = jnp.dot(x, wih[0], preferred_element_type=jnp.float32) + b_row[0]

    # Hoisted bias broadcasts for layers >= 1 (do NOT re-broadcast per step).
    bias_b = [None] + [jnp.broadcast_to(b_row[l], (B, 4 * H))
                       for l in range(1, num_layers)]

    h = [jnp.zeros((B, H), jnp.float32) for _ in range(num_layers)]
    c = [jnp.zeros((B, H), jnp.float32) for _ in range(num_layers)]
    outs = []                                              # last-layer h_t, in vregs

    # Statically unrolled recurrence.  Dependency DAG: (l, t) depends on
    # (l, t-1) and (l-1, t) only, so the scheduler overlaps layers wavefront
    # style; only h[l] @ W_hh_l sits on each layer's serial chain.
    for t in range(S):
        for l in range(num_layers):
            if l == 0:
                gin = gx0[t * B:(t + 1) * B, :]            # static, tile-aligned slice
            else:
                # Per-timestep input projection: depends on previous layer's h_t
                # only -> hides under this layer's recurrence slack.
                gin = jnp.dot(h[l - 1].astype(bf16), wih[l],
                              preferred_element_type=jnp.float32) + bias_b[l]
            gates = gin + jnp.dot(h[l].astype(bf16), whh[l],
                                  preferred_element_type=jnp.float32)  # (B, 4H) f32

            # Packed nonlinearities on the permuted [i, f, o | g] layout:
            # one sigmoid over 3H lanes, one tanh over H lanes.
            sig = jax.nn.sigmoid(gates[:, :3 * H])
            i_g = sig[:, 0 * H:1 * H]
            f_g = sig[:, 1 * H:2 * H]
            o_g = sig[:, 2 * H:3 * H]
            g_g = jnp.tanh(gates[:, 3 * H:])

            c[l] = f_g * c[l] + i_g * g_g
            h[l] = o_g * jnp.tanh(c[l])
        outs.append(h[num_layers - 1])

    # Single FC matmul after the loop: (B, S*H) @ (S*H, C).
    feats = jnp.concatenate(outs, axis=1).astype(bf16)     # (B, S*H)
    logits = jnp.dot(feats, wfc_ref[...], preferred_element_type=jnp.float32)
    out_ref[...] = (logits + bfc_ref[...]).astype(out_ref.dtype)


# ----------------------------------------------------------------------------
# Wrapper
# ----------------------------------------------------------------------------
def rnn_model_forward(params, x_bti):
    """x_bti: (B, S, I) batch_first float32, like the PyTorch module (eval)."""
    B, S, I = x_bti.shape
    H = params["lstm"][0]["w_hh_t"].shape[0]
    C = params["fc"]["bias"].shape[1]
    num_layers = len(params["lstm"])

    def _perm(w):
        # PyTorch gate order [i, f, g, o] -> kernel order [i, f, o, g] (last axis).
        return jnp.concatenate(
            [w[..., :2 * H], w[..., 3 * H:4 * H], w[..., 2 * H:3 * H]], axis=-1)

    # Pad batch to a multiple of 8 sublanes; padded rows evolve independently
    # (no cross-batch mixing) and are dropped at the end.  For large batches,
    # tile the batch across a parallel grid axis (v7x: second TensorCore).
    B_pad = ((B + 7) // 8) * 8
    B_TILE = B_pad if B_pad <= 256 else 256
    B_pad = ((B_pad + B_TILE - 1) // B_TILE) * B_TILE
    grid = (B_pad // B_TILE,)

    x_p = jnp.pad(x_bti, ((0, B_pad - B), (0, 0), (0, 0)))
    x_tm = jnp.transpose(x_p, (1, 0, 2))                   # (S, B_pad, I) time-major

    inputs = [x_tm]
    in_specs = [pl.BlockSpec((S, B_TILE, I), lambda b: (0, b, 0))]
    for lp in params["lstm"]:
        w_ih = _perm(lp["w_ih_t"]).astype(jnp.bfloat16)    # (in, 4H)
        w_hh = _perm(lp["w_hh_t"]).astype(jnp.bfloat16)    # (H, 4H)
        bias_p = _perm(lp["bias"])                         # (1, 4H) f32
        inputs += [w_ih, w_hh, bias_p]
        in_specs += [pl.BlockSpec(w_ih.shape, lambda b: (0, 0)),
                     pl.BlockSpec(w_hh.shape, lambda b: (0, 0)),
                     pl.BlockSpec(bias_p.shape, lambda b: (0, 0))]
    w_fc = params["fc"]["w_t"].astype(jnp.bfloat16)        # (S*H, C)
    b_fc = params["fc"]["bias"]                            # (1, C) f32
    inputs += [w_fc, b_fc]
    in_specs += [pl.BlockSpec(w_fc.shape, lambda b: (0, 0)),
                 pl.BlockSpec(b_fc.shape, lambda b: (0, 0))]

    kernel = functools.partial(_fused_rnn_kernel, num_layers=num_layers,
                               seq_len=S, batch_tile=B_TILE, hidden=H,
                               num_classes=C)

    out = pl.pallas_call(
        kernel,
        out_shape=jax.ShapeDtypeStruct((B_pad, C), jnp.float32),
        grid=grid,
        in_specs=in_specs,
        out_specs=pl.BlockSpec((B_TILE, C), lambda b: (b, 0)),
        compiler_params=pltpu.CompilerParams(
            dimension_semantics=("parallel",),
            vmem_limit_bytes=4 * 1024 * 1024),             # actual footprint ~0.2 MiB
    )(*inputs)
    return out[:B]


# ----------------------------------------------------------------------------
# Parameter init (PyTorch-style shapes, uniform(-k, k), k = 1/sqrt(H)).
# Stored in PyTorch gate order [i, f, g, o]; the wrapper permutes internally.
# ----------------------------------------------------------------------------
def init_params(key, input_size, hidden_size, num_layers, num_classes,
                sequence_length):
    params = {"lstm": [], "fc": None}
    k = 1.0 / jnp.sqrt(jnp.float32(hidden_size))
    for layer in range(num_layers):
        in_sz = input_size if layer == 0 else hidden_size
        key, k1, k2, k3, k4 = jax.random.split(key, 5)
        w_ih = jax.random.uniform(k1, (4 * hidden_size, in_sz), jnp.float32, -k, k)
        w_hh = jax.random.uniform(k2, (4 * hidden_size, hidden_size), jnp.float32, -k, k)
        b_ih = jax.random.uniform(k3, (4 * hidden_size,), jnp.float32, -k, k)
        b_hh = jax.random.uniform(k4, (4 * hidden_size,), jnp.float32, -k, k)
        params["lstm"].append({
            "w_ih_t": w_ih.T,                              # (in, 4H)
            "w_hh_t": w_hh.T,                              # (H, 4H)
            "bias": (b_ih + b_hh).reshape(1, 4 * hidden_size),
        })
    F = hidden_size * sequence_length
    kf = 1.0 / jnp.sqrt(jnp.float32(F))
    key, k1, k2 = jax.random.split(key, 3)
    w_fc = jax.random.uniform(k1, (num_classes, F), jnp.float32, -kf, kf)
    b_fc = jax.random.uniform(k2, (num_classes,), jnp.float32, -kf, kf)
    params["fc"] = {"w_t": w_fc.T, "bias": b_fc.reshape(1, num_classes)}
    return params


# ----------------------------------------------------------------------------
# Pure-JAX reference (mirrors the PyTorch forward, all-f32, PyTorch gate order).
# ----------------------------------------------------------------------------
def _reference_forward(params, x_bti):
    B, S, I = x_bti.shape
    H = params["lstm"][0]["w_hh_t"].shape[0]
    h_seq = x_bti
    for lp in params["lstm"]:
        h = jnp.zeros((B, H), jnp.float32)
        c = jnp.zeros((B, H), jnp.float32)
        outs = []
        for t in range(S):
            gates = h_seq[:, t, :] @ lp["w_ih_t"] + h @ lp["w_hh_t"] + lp["bias"]
            i_g = jax.nn.sigmoid(gates[:, :H])
            f_g = jax.nn.sigmoid(gates[:, H:2 * H])
            g_g = jnp.tanh(gates[:, 2 * H:3 * H])
            o_g = jax.nn.sigmoid(gates[:, 3 * H:])
            c = f_g * c + i_g * g_g
            h = o_g * jnp.tanh(c)
            outs.append(h)
        h_seq = jnp.stack(outs, axis=1)                    # (B, S, H)
    feats = h_seq.reshape(B, -1)                           # (B, S*H)
    return feats @ params["fc"]["w_t"] + params["fc"]["bias"]


if __name__ == "__main__":
    batch = 2
    input_size = 16
    hidden_size = 32
    num_layers = 2
    num_classes = 10
    sequence_length = 8

    key = jax.random.PRNGKey(0)
    key, xk = jax.random.split(key)
    x = jax.random.normal(xk, (batch, sequence_length, input_size), jnp.float32)

    params = init_params(key, input_size, hidden_size, num_layers,
                         num_classes, sequence_length)

    out = rnn_model_forward(params, x)
    out = jax.block_until_ready(out)
    assert out.shape == (batch, num_classes), out.shape

    ref = jax.block_until_ready(_reference_forward(params, x))
    # Tolerance left at 5e-2 to cover the bf16-operand MXU path.
    assert jnp.allclose(out, ref, atol=5e-2, rtol=5e-2), (out, ref)

    print("KERNEL_OK")
</pallas_src>

<mosaic_0001>
module attributes {stable_mosaic.version = 11 : i64} {
  func.func @_fused_rnn_kernel(%arg0: i32, %arg1: memref<8x8x16xf32, #tpu.memory_space<vmem>>, %arg2: memref<16x128xbf16, #tpu.memory_space<vmem>>, %arg3: memref<32x128xbf16, #tpu.memory_space<vmem>>, %arg4: memref<1x128xf32, #tpu.memory_space<vmem>>, %arg5: memref<32x128xbf16, #tpu.memory_space<vmem>>, %arg6: memref<32x128xbf16, #tpu.memory_space<vmem>>, %arg7: memref<1x128xf32, #tpu.memory_space<vmem>>, %arg8: memref<256x10xbf16, #tpu.memory_space<vmem>>, %arg9: memref<1x10xf32, #tpu.memory_space<vmem>>, %arg10: memref<8x10xf32, #tpu.memory_space<vmem>>) attributes {dimension_semantics = [#tpu.dimension_semantics<parallel>], iteration_bounds = array<i64: 1>, scalar_prefetch = 0 : i64, scratch_operands = 0 : i64, tpu.core_type = #tpu.core_type<tc>, window_params = [{transform_indices = @transform_0, window_bounds = array<i64: 8, 8, 16>}, {pipeline_mode = #tpu.pipeline_mode<synchronous>, transform_indices = @transform_1, window_bounds = array<i64: 16, 128>}, {pipeline_mode = #tpu.pipeline_mode<synchronous>, transform_indices = @transform_2, window_bounds = array<i64: 32, 128>}, {pipeline_mode = #tpu.pipeline_mode<synchronous>, transform_indices = @transform_3, window_bounds = array<i64: 1, 128>}, {pipeline_mode = #tpu.pipeline_mode<synchronous>, transform_indices = @transform_4, window_bounds = array<i64: 32, 128>}, {pipeline_mode = #tpu.pipeline_mode<synchronous>, transform_indices = @transform_5, window_bounds = array<i64: 32, 128>}, {pipeline_mode = #tpu.pipeline_mode<synchronous>, transform_indices = @transform_6, window_bounds = array<i64: 1, 128>}, {pipeline_mode = #tpu.pipeline_mode<synchronous>, transform_indices = @transform_7, window_bounds = array<i64: 256, 10>}, {pipeline_mode = #tpu.pipeline_mode<synchronous>, transform_indices = @transform_8, window_bounds = array<i64: 1, 10>}, {transform_indices = @transform_9, window_bounds = array<i64: 8, 10>}]} {
    %c0 = arith.constant 0 : index
    %c0_0 = arith.constant 0 : index
    %0 = vector.load %arg2[%c0, %c0_0] : memref<16x128xbf16, #tpu.memory_space<vmem>>, vector<16x128xbf16>
    %c0_1 = arith.constant 0 : index
    %c0_2 = arith.constant 0 : index
    %1 = vector.load %arg5[%c0_1, %c0_2] : memref<32x128xbf16, #tpu.memory_space<vmem>>, vector<32x128xbf16>
    %c0_3 = arith.constant 0 : index
    %c0_4 = arith.constant 0 : index
    %2 = vector.load %arg3[%c0_3, %c0_4] : memref<32x128xbf16, #tpu.memory_space<vmem>>, vector<32x128xbf16>
    %c0_5 = arith.constant 0 : index
    %c0_6 = arith.constant 0 : index
    %3 = vector.load %arg6[%c0_5, %c0_6] : memref<32x128xbf16, #tpu.memory_space<vmem>>, vector<32x128xbf16>
    %c0_7 = arith.constant 0 : index
    %c0_8 = arith.constant 0 : index
    %4 = vector.load %arg4[%c0_7, %c0_8] : memref<1x128xf32, #tpu.memory_space<vmem>>, vector<1x128xf32>
    %c0_9 = arith.constant 0 : index
    %c0_10 = arith.constant 0 : index
    %5 = vector.load %arg7[%c0_9, %c0_10] : memref<1x128xf32, #tpu.memory_space<vmem>>, vector<1x128xf32>
    %c0_11 = arith.constant 0 : index
    %c0_12 = arith.constant 0 : index
    %c0_13 = arith.constant 0 : index
    %6 = vector.load %arg1[%c0_11, %c0_12, %c0_13] : memref<8x8x16xf32, #tpu.memory_space<vmem>>, vector<8x8x16xf32>
    %7 = vector.shape_cast %6 : vector<8x8x16xf32> to vector<64x16xf32>
    %8 = arith.truncf %7 : vector<64x16xf32> to vector<64x16xbf16>
    %cst = arith.constant dense<0.000000e+00> : vector<64x128xf32>
    %9 = tpu.matmul %8, %0, %cst {dimension_numbers = #tpu.dot_dimension_numbers<[1], [0], [0], [1], [0, 0, 1, 1], [], []>} : vector<64x16xbf16>, vector<16x128xbf16>, vector<64x128xf32> -> vector<64x128xf32>
    %10 = vector.broadcast %4 : vector<1x128xf32> to vector<64x128xf32>
    %11 = arith.addf %9, %10 : vector<64x128xf32>
    %12 = vector.shape_cast %5 : vector<1x128xf32> to vector<1x128xf32>
    %13 = vector.broadcast %12 : vector<1x128xf32> to vector<8x128xf32>
    %cst_14 = arith.constant 0.000000e+00 : f32
    %14 = vector.broadcast %cst_14 : f32 to vector<8x32xf32>
    %cst_15 = arith.constant 0.000000e+00 : f32
    %15 = vector.broadcast %cst_15 : f32 to vector<8x32xf32>
    %cst_16 = arith.constant 0.000000e+00 : f32
    %16 = vector.broadcast %cst_16 : f32 to vector<8x32xf32>
    %cst_17 = arith.constant 0.000000e+00 : f32
    %17 = vector.broadcast %cst_17 : f32 to vector<8x32xf32>
    %18 = vector.extract_strided_slice %11 {offsets = [0, 0], sizes = [8, 128], strides = [1, 1]} : vector<64x128xf32> to vector<8x128xf32>
    %19 = arith.truncf %14 : vector<8x32xf32> to vector<8x32xbf16>
    %cst_18 = arith.constant dense<0.000000e+00> : vector<8x128xf32>
    %20 = tpu.matmul %19, %2, %cst_18 {dimension_numbers = #tpu.dot_dimension_numbers<[1], [0], [0], [1], [0, 0, 1, 1], [], []>} : vector<8x32xbf16>, vector<32x128xbf16>, vector<8x128xf32> -> vector<8x128xf32>
    %21 = arith.addf %18, %20 : vector<8x128xf32>
    %22 = vector.extract_strided_slice %21 {offsets = [0, 0], sizes = [8, 96], strides = [1, 1]} : vector<8x128xf32> to vector<8x96xf32>
    %23 = arith.negf %22 : vector<8x96xf32>
    %24 = math.exp %23 : vector<8x96xf32>
    %cst_19 = arith.constant 1.000000e+00 : f32
    %25 = vector.broadcast %cst_19 : f32 to vector<8x96xf32>
    %26 = arith.addf %25, %24 : vector<8x96xf32>
    %27 = arith.divf %25, %26 : vector<8x96xf32>
    %28 = vector.extract_strided_slice %27 {offsets = [0, 0], sizes = [8, 32], strides = [1, 1]} : vector<8x96xf32> to vector<8x32xf32>
    %29 = vector.extract_strided_slice %27 {offsets = [0, 32], sizes = [8, 32], strides = [1, 1]} : vector<8x96xf32> to vector<8x32xf32>
    %30 = vector.extract_strided_slice %27 {offsets = [0, 64], sizes = [8, 32], strides = [1, 1]} : vector<8x96xf32> to vector<8x32xf32>
    %31 = vector.extract_strided_slice %21 {offsets = [0, 96], sizes = [8, 32], strides = [1, 1]} : vector<8x128xf32> to vector<8x32xf32>
    %32 = math.tanh %31 : vector<8x32xf32>
    %33 = arith.mulf %29, %16 : vector<8x32xf32>
    %34 = arith.mulf %28, %32 : vector<8x32xf32>
    %35 = arith.addf %33, %34 : vector<8x32xf32>
    %36 = math.tanh %35 : vector<8x32xf32>
    %37 = arith.mulf %30, %36 : vector<8x32xf32>
    %38 = arith.truncf %37 : vector<8x32xf32> to vector<8x32xbf16>
    %cst_20 = arith.constant dense<0.000000e+00> : vector<8x128xf32>
    %39 = tpu.matmul %38, %1, %cst_20 {dimension_numbers = #tpu.dot_dimension_numbers<[1], [0], [0], [1], [0, 0, 1, 1], [], []>} : vector<8x32xbf16>, vector<32x128xbf16>, vector<8x128xf32> -> vector<8x128xf32>
    %40 = arith.addf %39, %13 : vector<8x128xf32>
    %41 = arith.truncf %15 : vector<8x32xf32> to vector<8x32xbf16>
    %cst_21 = arith.constant dense<0.000000e+00> : vector<8x128xf32>
    %42 = tpu.matmul %41, %3, %cst_21 {dimension_numbers = #tpu.dot_dimension_numbers<[1], [0], [0], [1], [0, 0, 1, 1], [], []>} : vector<8x32xbf16>, vector<32x128xbf16>, vector<8x128xf32> -> vector<8x128xf32>
    %43 = arith.addf %40, %42 : vector<8x128xf32>
    %44 = vector.extract_strided_slice %43 {offsets = [0, 0], sizes = [8, 96], strides = [1, 1]} : vector<8x128xf32> to vector<8x96xf32>
    %45 = arith.negf %44 : vector<8x96xf32>
    %46 = math.exp %45 : vector<8x96xf32>
    %cst_22 = arith.constant 1.000000e+00 : f32
    %47 = vector.broadcast %cst_22 : f32 to vector<8x96xf32>
    %48 = arith.addf %47, %46 : vector<8x96xf32>
    %49 = arith.divf %47, %48 : vector<8x96xf32>
    %50 = vector.extract_strided_slice %49 {offsets = [0, 0], sizes = [8, 32], strides = [1, 1]} : vector<8x96xf32> to vector<8x32xf32>
    %51 = vector.extract_strided_slice %49 {offsets = [0, 32], sizes = [8, 32], strides = [1, 1]} : vector<8x96xf32> to vector<8x32xf32>
    %52 = vector.extract_strided_slice %49 {offsets = [0, 64], sizes = [8, 32], strides = [1, 1]} : vector<8x96xf32> to vector<8x32xf32>
    %53 = vector.extract_strided_slice %43 {offsets = [0, 96], sizes = [8, 32], strides = [1, 1]} : vector<8x128xf32> to vector<8x32xf32>
    %54 = math.tanh %53 : vector<8x32xf32>
    %55 = arith.mulf %51, %17 : vector<8x32xf32>
    %56 = arith.mulf %50, %54 : vector<8x32xf32>
    %57 = arith.addf %55, %56 : vector<8x32xf32>
    %58 = math.tanh %57 : vector<8x32xf32>
    %59 = arith.mulf %52, %58 : vector<8x32xf32>
    %60 = vector.extract_strided_slice %11 {offsets = [8, 0], sizes = [8, 128], strides = [1, 1]} : vector<64x128xf32> to vector<8x128xf32>
    %61 = arith.truncf %37 : vector<8x32xf32> to vector<8x32xbf16>
    %cst_23 = arith.constant dense<0.000000e+00> : vector<8x128xf32>
    %62 = tpu.matmul %61, %2, %cst_23 {dimension_numbers = #tpu.dot_dimension_numbers<[1], [0], [0], [1], [0, 0, 1, 1], [], []>} : vector<8x32xbf16>, vector<32x128xbf16>, vector<8x128xf32> -> vector<8x128xf32>
    %63 = arith.addf %60, %62 : vector<8x128xf32>
    %64 = vector.extract_strided_slice %63 {offsets = [0, 0], sizes = [8, 96], strides = [1, 1]} : vector<8x128xf32> to vector<8x96xf32>
    %65 = arith.negf %64 : vector<8x96xf32>
    %66 = math.exp %65 : vector<8x96xf32>
    %cst_24 = arith.constant 1.000000e+00 : f32
    %67 = vector.broadcast %cst_24 : f32 to vector<8x96xf32>
    %68 = arith.addf %67, %66 : vector<8x96xf32>
    %69 = arith.divf %67, %68 : vector<8x96xf32>
    %70 = vector.extract_strided_slice %69 {offsets = [0, 0], sizes = [8, 32], strides = [1, 1]} : vector<8x96xf32> to vector<8x32xf32>
    %71 = vector.extract_strided_slice %69 {offsets = [0, 32], sizes = [8, 32], strides = [1, 1]} : vector<8x96xf32> to vector<8x32xf32>
    %72 = vector.extract_strided_slice %69 {offsets = [0, 64], sizes = [8, 32], strides = [1, 1]} : vector<8x96xf32> to vector<8x32xf32>
    %73 = vector.extract_strided_slice %63 {offsets = [0, 96], sizes = [8, 32], strides = [1, 1]} : vector<8x128xf32> to vector<8x32xf32>
    %74 = math.tanh %73 : vector<8x32xf32>
    %75 = arith.mulf %71, %35 : vector<8x32xf32>
    %76 = arith.mulf %70, %74 : vector<8x32xf32>
    %77 = arith.addf %75, %76 : vector<8x32xf32>
    %78 = math.tanh %77 : vector<8x32xf32>
    %79 = arith.mulf %72, %78 : vector<8x32xf32>
    %80 = arith.truncf %79 : vector<8x32xf32> to vector<8x32xbf16>
    %cst_25 = arith.constant dense<0.000000e+00> : vector<8x128xf32>
    %81 = tpu.matmul %80, %1, %cst_25 {dimension_numbers = #tpu.dot_dimension_numbers<[1], [0], [0], [1], [0, 0, 1, 1], [], []>} : vector<8x32xbf16>, vector<32x128xbf16>, vector<8x128xf32> -> vector<8x128xf32>
    %82 = arith.addf %81, %13 : vector<8x128xf32>
    %83 = arith.truncf %59 : vector<8x32xf32> to vector<8x32xbf16>
    %cst_26 = arith.constant dense<0.000000e+00> : vector<8x128xf32>
    %84 = tpu.matmul %83, %3, %cst_26 {dimension_numbers = #tpu.dot_dimension_numbers<[1], [0], [0], [1], [0, 0, 1, 1], [], []>} : vector<8x32xbf16>, vector<32x128xbf16>, vector<8x128xf32> -> vector<8x128xf32>
    %85 = arith.addf %82, %84 : vector<8x128xf32>
    %86 = vector.extract_strided_slice %85 {offsets = [0, 0], sizes = [8, 96], strides = [1, 1]} : vector<8x128xf32> to vector<8x96xf32>
    %87 = arith.negf %86 : vector<8x96xf32>
    %88 = math.exp %87 : vector<8x96xf32>
    %cst_27 = arith.constant 1.000000e+00 : f32
    %89 = vector.broadcast %cst_27 : f32 to vector<8x96xf32>
    %90 = arith.addf %89, %88 : vector<8x96xf32>
    %91 = arith.divf %89, %90 : vector<8x96xf32>
    %92 = vector.extract_strided_slice %91 {offsets = [0, 0], sizes = [8, 32], strides = [1, 1]} : vector<8x96xf32> to vector<8x32xf32>
    %93 = vector.extract_strided_slice %91 {offsets = [0, 32], sizes = [8, 32], strides = [1, 1]} : vector<8x96xf32> to vector<8x32xf32>
    %94 = vector.extract_strided_slice %91 {offsets = [0, 64], sizes = [8, 32], strides = [1, 1]} : vector<8x96xf32> to vector<8x32xf32>
    %95 = vector.extract_strided_slice %85 {offsets = [0, 96], sizes = [8, 32], strides = [1, 1]} : vector<8x128xf32> to vector<8x32xf32>
    %96 = math.tanh %95 : vector<8x32xf32>
    %97 = arith.mulf %93, %57 : vector<8x32xf32>
    %98 = arith.mulf %92, %96 : vector<8x32xf32>
    %99 = arith.addf %97, %98 : vector<8x32xf32>
    %100 = math.tanh %99 : vector<8x32xf32>
    %101 = arith.mulf %94, %100 : vector<8x32xf32>
    %102 = vector.extract_strided_slice %11 {offsets = [16, 0], sizes = [8, 128], strides = [1, 1]} : vector<64x128xf32> to vector<8x128xf32>
    %103 = arith.truncf %79 : vector<8x32xf32> to vector<8x32xbf16>
    %cst_28 = arith.constant dense<0.000000e+00> : vector<8x128xf32>
    %104 = tpu.matmul %103, %2, %cst_28 {dimension_numbers = #tpu.dot_dimension_numbers<[1], [0], [0], [1], [0, 0, 1, 1], [], []>} : vector<8x32xbf16>, vector<32x128xbf16>, vector<8x128xf32> -> vector<8x128xf32>
    %105 = arith.addf %102, %104 : vector<8x128xf32>
    %106 = vector.extract_strided_slice %105 {offsets = [0, 0], sizes = [8, 96], strides = [1, 1]} : vector<8x128xf32> to vector<8x96xf32>
    %107 = arith.negf %106 : vector<8x96xf32>
    %108 = math.exp %107 : vector<8x96xf32>
    %cst_29 = arith.constant 1.000000e+00 : f32
    %109 = vector.broadcast %cst_29 : f32 to vector<8x96xf32>
    %110 = arith.addf %109, %108 : vector<8x96xf32>
    %111 = arith.divf %109, %110 : vector<8x96xf32>
    %112 = vector.extract_strided_slice %111 {offsets = [0, 0], sizes = [8, 32], strides = [1, 1]} : vector<8x96xf32> to vector<8x32xf32>
    %113 = vector.extract_strided_slice %111 {offsets = [0, 32], sizes = [8, 32], strides = [1, 1]} : vector<8x96xf32> to vector<8x32xf32>
    %114 = vector.extract_strided_slice %111 {offsets = [0, 64], sizes = [8, 32], strides = [1, 1]} : vector<8x96xf32> to vector<8x32xf32>
    %115 = vector.extract_strided_slice %105 {offsets = [0, 96], sizes = [8, 32], strides = [1, 1]} : vector<8x128xf32> to vector<8x32xf32>
    %116 = math.tanh %115 : vector<8x32xf32>
    %117 = arith.mulf %113, %77 : vector<8x32xf32>
    %118 = arith.mulf %112, %116 : vector<8x32xf32>
    %119 = arith.addf %117, %118 : vector<8x32xf32>
    %120 = math.tanh %119 : vector<8x32xf32>
    %121 = arith.mulf %114, %120 : vector<8x32xf32>
    %122 = arith.truncf %121 : vector<8x32xf32> to vector<8x32xbf16>
    %cst_30 = arith.constant dense<0.000000e+00> : vector<8x128xf32>
    %123 = tpu.matmul %122, %1, %cst_30 {dimension_numbers = #tpu.dot_dimension_numbers<[1], [0], [0], [1], [0, 0, 1, 1], [], []>} : vector<8x32xbf16>, vector<32x128xbf16>, vector<8x128xf32> -> vector<8x128xf32>
    %124 = arith.addf %123, %13 : vector<8x128xf32>
    %125 = arith.truncf %101 : vector<8x32xf32> to vector<8x32xbf16>
    %cst_31 = arith.constant dense<0.000000e+00> : vector<8x128xf32>
    %126 = tpu.matmul %125, %3, %cst_31 {dimension_numbers = #tpu.dot_dimension_numbers<[1], [0], [0], [1], [0, 0, 1, 1], [], []>} : vector<8x32xbf16>, vector<32x128xbf16>, vector<8x128xf32> -> vector<8x128xf32>
    %127 = arith.addf %124, %126 : vector<8x128xf32>
    %128 = vector.extract_strided_slice %127 {offsets = [0, 0], sizes = [8, 96], strides = [1, 1]} : vector<8x128xf32> to vector<8x96xf32>
    %129 = arith.negf %128 : vector<8x96xf32>
    %130 = math.exp %129 : vector<8x96xf32>
    %cst_32 = arith.constant 1.000000e+00 : f32
    %131 = vector.broadcast %cst_32 : f32 to vector<8x96xf32>
    %132 = arith.addf %131, %130 : vector<8x96xf32>
    %133 = arith.divf %131, %132 : vector<8x96xf32>
    %134 = vector.extract_strided_slice %133 {offsets = [0, 0], sizes = [8, 32], strides = [1, 1]} : vector<8x96xf32> to vector<8x32xf32>
    %135 = vector.extract_strided_slice %133 {offsets = [0, 32], sizes = [8, 32], strides = [1, 1]} : vector<8x96xf32> to vector<8x32xf32>
    %136 = vector.extract_strided_slice %133 {offsets = [0, 64], sizes = [8, 32], strides = [1, 1]} : vector<8x96xf32> to vector<8x32xf32>
    %137 = vector.extract_strided_slice %127 {offsets = [0, 96], sizes = [8, 32], strides = [1, 1]} : vector<8x128xf32> to vector<8x32xf32>
    %138 = math.tanh %137 : vector<8x32xf32>
    %139 = arith.mulf %135, %99 : vector<8x32xf32>
    %140 = arith.mulf %134, %138 : vector<8x32xf32>
    %141 = arith.addf %139, %140 : vector<8x32xf32>
    %142 = math.tanh %141 : vector<8x32xf32>
    %143 = arith.mulf %136, %142 : vector<8x32xf32>
    %144 = vector.extract_strided_slice %11 {offsets = [24, 0], sizes = [8, 128], strides = [1, 1]} : vector<64x128xf32> to vector<8x128xf32>
    %145 = arith.truncf %121 : vector<8x32xf32> to vector<8x32xbf16>
    %cst_33 = arith.constant dense<0.000000e+00> : vector<8x128xf32>
    %146 = tpu.matmul %145, %2, %cst_33 {dimension_numbers = #tpu.dot_dimension_numbers<[1], [0], [0], [1], [0, 0, 1, 1], [], []>} : vector<8x32xbf16>, vector<32x128xbf16>, vector<8x128xf32> -> vector<8x128xf32>
    %147 = arith.addf %144, %146 : vector<8x128xf32>
    %148 = vector.extract_strided_slice %147 {offsets = [0, 0], sizes = [8, 96], strides = [1, 1]} : vector<8x128xf32> to vector<8x96xf32>
    %149 = arith.negf %148 : vector<8x96xf32>
    %150 = math.exp %149 : vector<8x96xf32>
    %cst_34 = arith.constant 1.000000e+00 : f32
    %151 = vector.broadcast %cst_34 : f32 to vector<8x96xf32>
    %152 = arith.addf %151, %150 : vector<8x96xf32>
    %153 = arith.divf %151, %152 : vector<8x96xf32>
    %154 = vector.extract_strided_slice %153 {offsets = [0, 0], sizes = [8, 32], strides = [1, 1]} : vector<8x96xf32> to vector<8x32xf32>
    %155 = vector.extract_strided_slice %153 {offsets = [0, 32], sizes = [8, 32], strides = [1, 1]} : vector<8x96xf32> to vector<8x32xf32>
    %156 = vector.extract_strided_slice %153 {offsets = [0, 64], sizes = [8, 32], strides = [1, 1]} : vector<8x96xf32> to vector<8x32xf32>
    %157 = vector.extract_strided_slice %147 {offsets = [0, 96], sizes = [8, 32], strides = [1, 1]} : vector<8x128xf32> to vector<8x32xf32>
    %158 = math.tanh %157 : vector<8x32xf32>
    %159 = arith.mulf %155, %119 : vector<8x32xf32>
    %160 = arith.mulf %154, %158 : vector<8x32xf32>
    %161 = arith.addf %159, %160 : vector<8x32xf32>
    %162 = math.tanh %161 : vector<8x32xf32>
    %163 = arith.mulf %156, %162 : vector<8x32xf32>
    %164 = arith.truncf %163 : vector<8x32xf32> to vector<8x32xbf16>
    %cst_35 = arith.constant dense<0.000000e+00> : vector<8x128xf32>
    %165 = tpu.matmul %164, %1, %cst_35 {dimension_numbers = #tpu.dot_dimension_numbers<[1], [0], [0], [1], [0, 0, 1, 1], [], []>} : vector<8x32xbf16>, vector<32x128xbf16>, vector<8x128xf32> -> vector<8x128xf32>
    %166 = arith.addf %165, %13 : vector<8x128xf32>
    %167 = arith.truncf %143 : vector<8x32xf32> to vector<8x32xbf16>
    %cst_36 = arith.constant dense<0.000000e+00> : vector<8x128xf32>
    %168 = tpu.matmul %167, %3, %cst_36 {dimension_numbers = #tpu.dot_dimension_numbers<[1], [0], [0], [1], [0, 0, 1, 1], [], []>} : vector<8x32xbf16>, vector<32x128xbf16>, vector<8x128xf32> -> vector<8x128xf32>
    %169 = arith.addf %166, %168 : vector<8x128xf32>
    %170 = vector.extract_strided_slice %169 {offsets = [0, 0], sizes = [8, 96], strides = [1, 1]} : vector<8x128xf32> to vector<8x96xf32>
    %171 = arith.negf %170 : vector<8x96xf32>
    %172 = math.exp %171 : vector<8x96xf32>
    %cst_37 = arith.constant 1.000000e+00 : f32
    %173 = vector.broadcast %cst_37 : f32 to vector<8x96xf32>
    %174 = arith.addf %173, %172 : vector<8x96xf32>
    %175 = arith.divf %173, %174 : vector<8x96xf32>
    %176 = vector.extract_strided_slice %175 {offsets = [0, 0], sizes = [8, 32], strides = [1, 1]} : vector<8x96xf32> to vector<8x32xf32>
    %177 = vector.extract_strided_slice %175 {offsets = [0, 32], sizes = [8, 32], strides = [1, 1]} : vector<8x96xf32> to vector<8x32xf32>
    %178 = vector.extract_strided_slice %175 {offsets = [0, 64], sizes = [8, 32], strides = [1, 1]} : vector<8x96xf32> to vector<8x32xf32>
    %179 = vector.extract_strided_slice %169 {offsets = [0, 96], sizes = [8, 32], strides = [1, 1]} : vector<8x128xf32> to vector<8x32xf32>
    %180 = math.tanh %179 : vector<8x32xf32>
    %181 = arith.mulf %177, %141 : vector<8x32xf32>
    %182 = arith.mulf %176, %180 : vector<8x32xf32>
    %183 = arith.addf %181, %182 : vector<8x32xf32>
    %184 = math.tanh %183 : vector<8x32xf32>
    %185 = arith.mulf %178, %184 : vector<8x32xf32>
    %186 = vector.extract_strided_slice %11 {offsets = [32, 0], sizes = [8, 128], strides = [1, 1]} : vector<64x128xf32> to vector<8x128xf32>
    %187 = arith.truncf %163 : vector<8x32xf32> to vector<8x32xbf16>
    %cst_38 = arith.constant dense<0.000000e+00> : vector<8x128xf32>
    %188 = tpu.matmul %187, %2, %cst_38 {dimension_numbers = #tpu.dot_dimension_numbers<[1], [0], [0], [1], [0, 0, 1, 1], [], []>} : vector<8x32xbf16>, vector<32x128xbf16>, vector<8x128xf32> -> vector<8x128xf32>
    %189 = arith.addf %186, %188 : vector<8x128xf32>
    %190 = vector.extract_strided_slice %189 {offsets = [0, 0], sizes = [8, 96], strides = [1, 1]} : vector<8x128xf32> to vector<8x96xf32>
    %191 = arith.negf %190 : vector<8x96xf32>
    %192 = math.exp %191 : vector<8x96xf32>
    %cst_39 = arith.constant 1.000000e+00 : f32
    %193 = vector.broadcast %cst_39 : f32 to vector<8x96xf32>
    %194 = arith.addf %193, %192 : vector<8x96xf32>
    %195 = arith.divf %193, %194 : vector<8x96xf32>
    %196 = vector.extract_strided_slice %195 {offsets = [0, 0], sizes = [8, 32], strides = [1, 1]} : vector<8x96xf32> to vector<8x32xf32>
    %197 = vector.extract_strided_slice %195 {offsets = [0, 32], sizes = [8, 32], strides = [1, 1]} : vector<8x96xf32> to vector<8x32xf32>
    %198 = vector.extract_strided_slice %195 {offsets = [0, 64], sizes = [8, 32], strides = [1, 1]} : vector<8x96xf32> to vector<8x32xf32>
    %199 = vector.extract_strided_slice %189 {offsets = [0, 96], sizes = [8, 32], strides = [1, 1]} : vector<8x128xf32> to vector<8x32xf32>
    %200 = math.tanh %199 : vector<8x32xf32>
    %201 = arith.mulf %197, %161 : vector<8x32xf32>
    %202 = arith.mulf %196, %200 : vector<8x32xf32>
    %203 = arith.addf %201, %202 : vector<8x32xf32>
    %204 = math.tanh %203 : vector<8x32xf32>
    %205 = arith.mulf %198, %204 : vector<8x32xf32>
    %206 = arith.truncf %205 : vector<8x32xf32> to vector<8x32xbf16>
    %cst_40 = arith.constant dense<0.000000e+00> : vector<8x128xf32>
    %207 = tpu.matmul %206, %1, %cst_40 {dimension_numbers = #tpu.dot_dimension_numbers<[1], [0], [0], [1], [0, 0, 1, 1], [], []>} : vector<8x32xbf16>, vector<32x128xbf16>, vector<8x128xf32> -> vector<8x128xf32>
    %208 = arith.addf %207, %13 : vector<8x128xf32>
    %209 = arith.truncf %185 : vector<8x32xf32> to vector<8x32xbf16>
    %cst_41 = arith.constant dense<0.000000e+00> : vector<8x128xf32>
    %210 = tpu.matmul %209, %3, %cst_41 {dimension_numbers = #tpu.dot_dimension_numbers<[1], [0], [0], [1], [0, 0, 1, 1], [], []>} : vector<8x32xbf16>, vector<32x128xbf16>, vector<8x128xf32> -> vector<8x128xf32>
    %211 = arith.addf %208, %210 : vector<8x128xf32>
    %212 = vector.extract_strided_slice %211 {offsets = [0, 0], sizes = [8, 96], strides = [1, 1]} : vector<8x128xf32> to vector<8x96xf32>
    %213 = arith.negf %212 : vector<8x96xf32>
    %214 = math.exp %213 : vector<8x96xf32>
    %cst_42 = arith.constant 1.000000e+00 : f32
    %215 = vector.broadcast %cst_42 : f32 to vector<8x96xf32>
    %216 = arith.addf %215, %214 : vector<8x96xf32>
    %217 = arith.divf %215, %216 : vector<8x96xf32>
    %218 = vector.extract_strided_slice %217 {offsets = [0, 0], sizes = [8, 32], strides = [1, 1]} : vector<8x96xf32> to vector<8x32xf32>
    %219 = vector.extract_strided_slice %217 {offsets = [0, 32], sizes = [8, 32], strides = [1, 1]} : vector<8x96xf32> to vector<8x32xf32>
    %220 = vector.extract_strided_slice %217 {offsets = [0, 64], sizes = [8, 32], strides = [1, 1]} : vector<8x96xf32> to vector<8x32xf32>
    %221 = vector.extract_strided_slice %211 {offsets = [0, 96], sizes = [8, 32], strides = [1, 1]} : vector<8x128xf32> to vector<8x32xf32>
    %222 = math.tanh %221 : vector<8x32xf32>
    %223 = arith.mulf %219, %183 : vector<8x32xf32>
    %224 = arith.mulf %218, %222 : vector<8x32xf32>
    %225 = arith.addf %223, %224 : vector<8x32xf32>
    %226 = math.tanh %225 : vector<8x32xf32>
    %227 = arith.mulf %220, %226 : vector<8x32xf32>
    %228 = vector.extract_strided_slice %11 {offsets = [40, 0], sizes = [8, 128], strides = [1, 1]} : vector<64x128xf32> to vector<8x128xf32>
    %229 = arith.truncf %205 : vector<8x32xf32> to vector<8x32xbf16>
    %cst_43 = arith.constant dense<0.000000e+00> : vector<8x128xf32>
    %230 = tpu.matmul %229, %2, %cst_43 {dimension_numbers = #tpu.dot_dimension_numbers<[1], [0], [0], [1], [0, 0, 1, 1], [], []>} : vector<8x32xbf16>, vector<32x128xbf16>, vector<8x128xf32> -> vector<8x128xf32>
    %231 = arith.addf %228, %230 : vector<8x128xf32>
    %232 = vector.extract_strided_slice %231 {offsets = [0, 0], sizes = [8, 96], strides = [1, 1]} : vector<8x128xf32> to vector<8x96xf32>
    %233 = arith.negf %232 : vector<8x96xf32>
    %234 = math.exp %233 : vector<8x96xf32>
    %cst_44 = arith.constant 1.000000e+00 : f32
    %235 = vector.broadcast %cst_44 : f32 to vector<8x96xf32>
    %236 = arith.addf %235, %234 : vector<8x96xf32>
    %237 = arith.divf %235, %236 : vector<8x96xf32>
    %238 = vector.extract_strided_slice %237 {offsets = [0, 0], sizes = [8, 32], strides = [1, 1]} : vector<8x96xf32> to vector<8x32xf32>
    %239 = vector.extract_strided_slice %237 {offsets = [0, 32], sizes = [8, 32], strides = [1, 1]} : vector<8x96xf32> to vector<8x32xf32>
    %240 = vector.extract_strided_slice %237 {offsets = [0, 64], sizes = [8, 32], strides = [1, 1]} : vector<8x96xf32> to vector<8x32xf32>
    %241 = vector.extract_strided_slice %231 {offsets = [0, 96], sizes = [8, 32], strides = [1, 1]} : vector<8x128xf32> to vector<8x32xf32>
    %242 = math.tanh %241 : vector<8x32xf32>
    %243 = arith.mulf %239, %203 : vector<8x32xf32>
    %244 = arith.mulf %238, %242 : vector<8x32xf32>
    %245 = arith.addf %243, %244 : vector<8x32xf32>
    %246 = math.tanh %245 : vector<8x32xf32>
    %247 = arith.mulf %240, %246 : vector<8x32xf32>
    %248 = arith.truncf %247 : vector<8x32xf32> to vector<8x32xbf16>
    %cst_45 = arith.constant dense<0.000000e+00> : vector<8x128xf32>
    %249 = tpu.matmul %248, %1, %cst_45 {dimension_numbers = #tpu.dot_dimension_numbers<[1], [0], [0], [1], [0, 0, 1, 1], [], []>} : vector<8x32xbf16>, vector<32x128xbf16>, vector<8x128xf32> -> vector<8x128xf32>
    %250 = arith.addf %249, %13 : vector<8x128xf32>
    %251 = arith.truncf %227 : vector<8x32xf32> to vector<8x32xbf16>
    %cst_46 = arith.constant dense<0.000000e+00> : vector<8x128xf32>
    %252 = tpu.matmul %251, %3, %cst_46 {dimension_numbers = #tpu.dot_dimension_numbers<[1], [0], [0], [1], [0, 0, 1, 1], [], []>} : vector<8x32xbf16>, vector<32x128xbf16>, vector<8x128xf32> -> vector<8x128xf32>
    %253 = arith.addf %250, %252 : vector<8x128xf32>
    %254 = vector.extract_strided_slice %253 {offsets = [0, 0], sizes = [8, 96], strides = [1, 1]} : vector<8x128xf32> to vector<8x96xf32>
    %255 = arith.negf %254 : vector<8x96xf32>
    %256 = math.exp %255 : vector<8x96xf32>
    %cst_47 = arith.constant 1.000000e+00 : f32
    %257 = vector.broadcast %cst_47 : f32 to vector<8x96xf32>
    %258 = arith.addf %257, %256 : vector<8x96xf32>
    %259 = arith.divf %257, %258 : vector<8x96xf32>
    %260 = vector.extract_strided_slice %259 {offsets = [0, 0], sizes = [8, 32], strides = [1, 1]} : vector<8x96xf32> to vector<8x32xf32>
    %261 = vector.extract_strided_slice %259 {offsets = [0, 32], sizes = [8, 32], strides = [1, 1]} : vector<8x96xf32> to vector<8x32xf32>
    %262 = vector.extract_strided_slice %259 {offsets = [0, 64], sizes = [8, 32], strides = [1, 1]} : vector<8x96xf32> to vector<8x32xf32>
    %263 = vector.extract_strided_slice %253 {offsets = [0, 96], sizes = [8, 32], strides = [1, 1]} : vector<8x128xf32> to vector<8x32xf32>
    %264 = math.tanh %263 : vector<8x32xf32>
    %265 = arith.mulf %261, %225 : vector<8x32xf32>
    %266 = arith.mulf %260, %264 : vector<8x32xf32>
    %267 = arith.addf %265, %266 : vector<8x32xf32>
    %268 = math.tanh %267 : vector<8x32xf32>
    %269 = arith.mulf %262, %268 : vector<8x32xf32>
    %270 = vector.extract_strided_slice %11 {offsets = [48, 0], sizes = [8, 128], strides = [1, 1]} : vector<64x128xf32> to vector<8x128xf32>
    %271 = arith.truncf %247 : vector<8x32xf32> to vector<8x32xbf16>
    %cst_48 = arith.constant dense<0.000000e+00> : vector<8x128xf32>
    %272 = tpu.matmul %271, %2, %cst_48 {dimension_numbers = #tpu.dot_dimension_numbers<[1], [0], [0], [1], [0, 0, 1, 1], [], []>} : vector<8x32xbf16>, vector<32x128xbf16>, vector<8x128xf32> -> vector<8x128xf32>
    %273 = arith.addf %270, %272 : vector<8x128xf32>
    %274 = vector.extract_strided_slice %273 {offsets = [0, 0], sizes = [8, 96], strides = [1, 1]} : vector<8x128xf32> to vector<8x96xf32>
    %275 = arith.negf %274 : vector<8x96xf32>
    %276 = math.exp %275 : vector<8x96xf32>
    %cst_49 = arith.constant 1.000000e+00 : f32
    %277 = vector.broadcast %cst_49 : f32 to vector<8x96xf32>
    %278 = arith.addf %277, %276 : vector<8x96xf32>
    %279 = arith.divf %277, %278 : vector<8x96xf32>
    %280 = vector.extract_strided_slice %279 {offsets = [0, 0], sizes = [8, 32], strides = [1, 1]} : vector<8x96xf32> to vector<8x32xf32>
    %281 = vector.extract_strided_slice %279 {offsets = [0, 32], sizes = [8, 32], strides = [1, 1]} : vector<8x96xf32> to vector<8x32xf32>
    %282 = vector.extract_strided_slice %279 {offsets = [0, 64], sizes = [8, 32], strides = [1, 1]} : vector<8x96xf32> to vector<8x32xf32>
    %283 = vector.extract_strided_slice %273 {offsets = [0, 96], sizes = [8, 32], strides = [1, 1]} : vector<8x128xf32> to vector<8x32xf32>
    %284 = math.tanh %283 : vector<8x32xf32>
    %285 = arith.mulf %281, %245 : vector<8x32xf32>
    %286 = arith.mulf %280, %284 : vector<8x32xf32>
    %287 = arith.addf %285, %286 : vector<8x32xf32>
    %288 = math.tanh %287 : vector<8x32xf32>
    %289 = arith.mulf %282, %288 : vector<8x32xf32>
    %290 = arith.truncf %289 : vector<8x32xf32> to vector<8x32xbf16>
    %cst_50 = arith.constant dense<0.000000e+00> : vector<8x128xf32>
    %291 = tpu.matmul %290, %1, %cst_50 {dimension_numbers = #tpu.dot_dimension_numbers<[1], [0], [0], [1], [0, 0, 1, 1], [], []>} : vector<8x32xbf16>, vector<32x128xbf16>, vector<8x128xf32> -> vector<8x128xf32>
    %292 = arith.addf %291, %13 : vector<8x128xf32>
    %293 = arith.truncf %269 : vector<8x32xf32> to vector<8x32xbf16>
    %cst_51 = arith.constant dense<0.000000e+00> : vector<8x128xf32>
    %294 = tpu.matmul %293, %3, %cst_51 {dimension_numbers = #tpu.dot_dimension_numbers<[1], [0], [0], [1], [0, 0, 1, 1], [], []>} : vector<8x32xbf16>, vector<32x128xbf16>, vector<8x128xf32> -> vector<8x128xf32>
    %295 = arith.addf %292, %294 : vector<8x128xf32>
    %296 = vector.extract_strided_slice %295 {offsets = [0, 0], sizes = [8, 96], strides = [1, 1]} : vector<8x128xf32> to vector<8x96xf32>
    %297 = arith.negf %296 : vector<8x96xf32>
    %298 = math.exp %297 : vector<8x96xf32>
    %cst_52 = arith.constant 1.000000e+00 : f32
    %299 = vector.broadcast %cst_52 : f32 to vector<8x96xf32>
    %300 = arith.addf %299, %298 : vector<8x96xf32>
    %301 = arith.divf %299, %300 : vector<8x96xf32>
    %302 = vector.extract_strided_slice %301 {offsets = [0, 0], sizes = [8, 32], strides = [1, 1]} : vector<8x96xf32> to vector<8x32xf32>
    %303 = vector.extract_strided_slice %301 {offsets = [0, 32], sizes = [8, 32], strides = [1, 1]} : vector<8x96xf32> to vector<8x32xf32>
    %304 = vector.extract_strided_slice %301 {offsets = [0, 64], sizes = [8, 32], strides = [1, 1]} : vector<8x96xf32> to vector<8x32xf32>
    %305 = vector.extract_strided_slice %295 {offsets = [0, 96], sizes = [8, 32], strides = [1, 1]} : vector<8x128xf32> to vector<8x32xf32>
    %306 = math.tanh %305 : vector<8x32xf32>
    %307 = arith.mulf %303, %267 : vector<8x32xf32>
    %308 = arith.mulf %302, %306 : vector<8x32xf32>
    %309 = arith.addf %307, %308 : vector<8x32xf32>
    %310 = math.tanh %309 : vector<8x32xf32>
    %311 = arith.mulf %304, %310 : vector<8x32xf32>
    %312 = vector.extract_strided_slice %11 {offsets = [56, 0], sizes = [8, 128], strides = [1, 1]} : vector<64x128xf32> to vector<8x128xf32>
    %313 = arith.truncf %289 : vector<8x32xf32> to vector<8x32xbf16>
    %cst_53 = arith.constant dense<0.000000e+00> : vector<8x128xf32>
    %314 = tpu.matmul %313, %2, %cst_53 {dimension_numbers = #tpu.dot_dimension_numbers<[1], [0], [0], [1], [0, 0, 1, 1], [], []>} : vector<8x32xbf16>, vector<32x128xbf16>, vector<8x128xf32> -> vector<8x128xf32>
    %315 = arith.addf %312, %314 : vector<8x128xf32>
    %316 = vector.extract_strided_slice %315 {offsets = [0, 0], sizes = [8, 96], strides = [1, 1]} : vector<8x128xf32> to vector<8x96xf32>
    %317 = arith.negf %316 : vector<8x96xf32>
    %318 = math.exp %317 : vector<8x96xf32>
    %cst_54 = arith.constant 1.000000e+00 : f32
    %319 = vector.broadcast %cst_54 : f32 to vector<8x96xf32>
    %320 = arith.addf %319, %318 : vector<8x96xf32>
    %321 = arith.divf %319, %320 : vector<8x96xf32>
    %322 = vector.extract_strided_slice %321 {offsets = [0, 0], sizes = [8, 32], strides = [1, 1]} : vector<8x96xf32> to vector<8x32xf32>
    %323 = vector.extract_strided_slice %321 {offsets = [0, 32], sizes = [8, 32], strides = [1, 1]} : vector<8x96xf32> to vector<8x32xf32>
    %324 = vector.extract_strided_slice %321 {offsets = [0, 64], sizes = [8, 32], strides = [1, 1]} : vector<8x96xf32> to vector<8x32xf32>
    %325 = vector.extract_strided_slice %315 {offsets = [0, 96], sizes = [8, 32], strides = [1, 1]} : vector<8x128xf32> to vector<8x32xf32>
    %326 = math.tanh %325 : vector<8x32xf32>
    %327 = arith.mulf %323, %287 : vector<8x32xf32>
    %328 = arith.mulf %322, %326 : vector<8x32xf32>
    %329 = arith.addf %327, %328 : vector<8x32xf32>
    %330 = math.tanh %329 : vector<8x32xf32>
    %331 = arith.mulf %324, %330 : vector<8x32xf32>
    %332 = arith.truncf %331 : vector<8x32xf32> to vector<8x32xbf16>
    %cst_55 = arith.constant dense<0.000000e+00> : vector<8x128xf32>
    %333 = tpu.matmul %332, %1, %cst_55 {dimension_numbers = #tpu.dot_dimension_numbers<[1], [0], [0], [1], [0, 0, 1, 1], [], []>} : vector<8x32xbf16>, vector<32x128xbf16>, vector<8x128xf32> -> vector<8x128xf32>
    %334 = arith.addf %333, %13 : vector<8x128xf32>
    %335 = arith.truncf %311 : vector<8x32xf32> to vector<8x32xbf16>
    %cst_56 = arith.constant dense<0.000000e+00> : vector<8x128xf32>
    %336 = tpu.matmul %335, %3, %cst_56 {dimension_numbers = #tpu.dot_dimension_numbers<[1], [0], [0], [1], [0, 0, 1, 1], [], []>} : vector<8x32xbf16>, vector<32x128xbf16>, vector<8x128xf32> -> vector<8x128xf32>
    %337 = arith.addf %334, %336 : vector<8x128xf32>
    %338 = vector.extract_strided_slice %337 {offsets = [0, 0], sizes = [8, 96], strides = [1, 1]} : vector<8x128xf32> to vector<8x96xf32>
    %339 = arith.negf %338 : vector<8x96xf32>
    %340 = math.exp %339 : vector<8x96xf32>
    %cst_57 = arith.constant 1.000000e+00 : f32
    %341 = vector.broadcast %cst_57 : f32 to vector<8x96xf32>
    %342 = arith.addf %341, %340 : vector<8x96xf32>
    %343 = arith.divf %341, %342 : vector<8x96xf32>
    %344 = vector.extract_strided_slice %343 {offsets = [0, 0], sizes = [8, 32], strides = [1, 1]} : vector<8x96xf32> to vector<8x32xf32>
    %345 = vector.extract_strided_slice %343 {offsets = [0, 32], sizes = [8, 32], strides = [1, 1]} : vector<8x96xf32> to vector<8x32xf32>
    %346 = vector.extract_strided_slice %343 {offsets = [0, 64], sizes = [8, 32], strides = [1, 1]} : vector<8x96xf32> to vector<8x32xf32>
    %347 = vector.extract_strided_slice %337 {offsets = [0, 96], sizes = [8, 32], strides = [1, 1]} : vector<8x128xf32> to vector<8x32xf32>
    %348 = math.tanh %347 : vector<8x32xf32>
    %349 = arith.mulf %345, %309 : vector<8x32xf32>
    %350 = arith.mulf %344, %348 : vector<8x32xf32>
    %351 = arith.addf %349, %350 : vector<8x32xf32>
    %352 = math.tanh %351 : vector<8x32xf32>
    %353 = arith.mulf %346, %352 : vector<8x32xf32>
    %354 = tpu.concatenate %59, %101, %143, %185, %227, %269, %311, %353 in 1 : vector<8x32xf32>, vector<8x32xf32>, vector<8x32xf32>, vector<8x32xf32>, vector<8x32xf32>, vector<8x32xf32>, vector<8x32xf32>, vector<8x32xf32> -> vector<8x256xf32>
    %355 = arith.truncf %354 : vector<8x256xf32> to vector<8x256xbf16>
    %c0_58 = arith.constant 0 : index
    %c0_59 = arith.constant 0 : index
    %356 = vector.load %arg8[%c0_58, %c0_59] : memref<256x10xbf16, #tpu.memory_space<vmem>>, vector<256x10xbf16>
    %cst_60 = arith.constant dense<0.000000e+00> : vector<8x10xf32>
    %357 = tpu.matmul %355, %356, %cst_60 {dimension_numbers = #tpu.dot_dimension_numbers<[1], [0], [0], [1], [0, 0, 1, 1], [], []>} : vector<8x256xbf16>, vector<256x10xbf16>, vector<8x10xf32> -> vector<8x10xf32>
    %c0_61 = arith.constant 0 : index
    %c0_62 = arith.constant 0 : index
    %358 = vector.load %arg9[%c0_61, %c0_62] : memref<1x10xf32, #tpu.memory_space<vmem>>, vector<1x10xf32>
    %359 = vector.broadcast %358 : vector<1x10xf32> to vector<8x10xf32>
    %360 = arith.addf %357, %359 : vector<8x10xf32>
    %c0_63 = arith.constant 0 : index
    %c0_64 = arith.constant 0 : index
    %361 = vector.load %arg10[%c0_63, %c0_64] : memref<8x10xf32, #tpu.memory_space<vmem>>, vector<8x10xf32>
    tpu.vector_store %arg10[%c0_63, %c0_64], %360 {strides = array<i32>} : memref<8x10xf32, #tpu.memory_space<vmem>>, vector<8x10xf32>,
    return
  }
  func.func @transform_0(%arg0: i32) -> (i32, i32, i32) {
    %c0_i32 = arith.constant 0 : i32
    %c0_i32_0 = arith.constant 0 : i32
    %c0_i32_1 = arith.constant 0 : i32
    return %c0_i32, %arg0, %c0_i32_0 : i32, i32, i32
  }
  func.func @transform_1(%arg0: i32) -> (i32, i32) {
    %c0_i32 = arith.constant 0 : i32
    %c0_i32_0 = arith.constant 0 : i32
    %c0_i32_1 = arith.constant 0 : i32
    return %c0_i32, %c0_i32_0 : i32, i32
  }
  func.func @transform_2(%arg0: i32) -> (i32, i32) {
    %c0_i32 = arith.constant 0 : i32
    %c0_i32_0 = arith.constant 0 : i32
    %c0_i32_1 = arith.constant 0 : i32
    return %c0_i32, %c0_i32_0 : i32, i32
  }
  func.func @transform_3(%arg0: i32) -> (i32, i32) {
    %c0_i32 = arith.constant 0 : i32
    %c0_i32_0 = arith.constant 0 : i32
    %c0_i32_1 = arith.constant 0 : i32
    return %c0_i32, %c0_i32_0 : i32, i32
  }
  func.func @transform_4(%arg0: i32) -> (i32, i32) {
    %c0_i32 = arith.constant 0 : i32
    %c0_i32_0 = arith.constant 0 : i32
    %c0_i32_1 = arith.constant 0 : i32
    return %c0_i32, %c0_i32_0 : i32, i32
  }
  func.func @transform_5(%arg0: i32) -> (i32, i32) {
    %c0_i32 = arith.constant 0 : i32
    %c0_i32_0 = arith.constant 0 : i32
    %c0_i32_1 = arith.constant 0 : i32
    return %c0_i32, %c0_i32_0 : i32, i32
  }
  func.func @transform_6(%arg0: i32) -> (i32, i32) {
    %c0_i32 = arith.constant 0 : i32
    %c0_i32_0 = arith.constant 0 : i32
    %c0_i32_1 = arith.constant 0 : i32
    return %c0_i32, %c0_i32_0 : i32, i32
  }
  func.func @transform_7(%arg0: i32) -> (i32, i32) {
    %c0_i32 = arith.constant 0 : i32
    %c0_i32_0 = arith.constant 0 : i32
    %c0_i32_1 = arith.constant 0 : i32
    return %c0_i32, %c0_i32_0 : i32, i32
  }
  func.func @transform_8(%arg0: i32) -> (i32, i32) {
    %c0_i32 = arith.constant 0 : i32
    %c0_i32_0 = arith.constant 0 : i32
    %c0_i32_1 = arith.constant 0 : i32
    return %c0_i32, %c0_i32_0 : i32, i32
  }
  func.func @transform_9(%arg0: i32) -> (i32, i32) {
    %c0_i32 = arith.constant 0 : i32
    %c0_i32_0 = arith.constant 0 : i32
    return %arg0, %c0_i32 : i32, i32
  }
}

</mosaic_0001>

<llo_original>
// kernel: tpu_custom_call.1
$region0: #{tpu_custom_call.1}
  #allocation0 [shape = 'u32[]', space=smem, size = 0x4, offset = 0x4, fixed_abs, tag = 'smem constant byte address 0x4 - core index']
  #allocation1 [shape = 'u32[144,128]{1,0:T(1,128)}', space=vmem, size = 0x12000, scoped, tag = 'internal scratch']
  %s0 = inlined_call_operand.vmem [shape: f32[8,8,16], index: 0, kind: input, shape index: {}]
  %s1 = inlined_call_operand.vmem [shape: bf16[16,128], index: 1, kind: input, shape index: {}]
  %s2 = inlined_call_operand.vmem [shape: bf16[32,128], index: 2, kind: input, shape index: {}]
  %s3 = inlined_call_operand.vmem [shape: f32[1,128], index: 3, kind: input, shape index: {}]
  %s4 = inlined_call_operand.vmem [shape: bf16[32,128], index: 4, kind: input, shape index: {}]
  %s5 = inlined_call_operand.vmem [shape: bf16[32,128], index: 5, kind: input, shape index: {}]
  %s6 = inlined_call_operand.vmem [shape: f32[1,128], index: 6, kind: input, shape index: {}]
  %s7 = inlined_call_operand.vmem [shape: bf16[256,10], index: 7, kind: input, shape index: {}]
  %s8 = inlined_call_operand.vmem [shape: f32[1,10], index: 8, kind: input, shape index: {}]
  %s9 = inlined_call_operand.hbm [shape: f32[8,10], index: 9, kind: output, shape index: {}]
  %s10 = sld [smem:[#allocation0]]
  $region46: #{tpu_custom_call.1} parent=0
    _
  %s12 = ssub.s32 1, %s10
  %s13 = scalar_select 0, %s12, %s10
  $region1: #{tpu_custom_call.1} parent=0
    #allocation2 [shape = 'u8[4096]{0}', space=vmem, size = 0x1000, scoped, tag = 'output window, operand 0, single buffered']
    #allocation3 [shape = 's32[1]{0}', space=sflag, size = 0x4, scoped, tag = 'scoped memory for tpu_custom_call.1']
    %14 = vsyncpa [#allocation3], 0
    // Predicated region
    $region2: #{tpu_custom_call.1} parent=1 // pred_check
      _
    $region3: #{tpu_custom_call.1} parent=1 // pred_check_branch
      %16 = sbr.rel (0) target = $region5
    $region4: #{tpu_custom_call.1} parent=1 // pred_region
      _
    $region5: #{tpu_custom_call.1} parent=1 // pred_fallthru
      _
    // Predicated region
    $region6: #{tpu_custom_call.1} parent=1 // pred_check
      _
    $region7: #{tpu_custom_call.1} parent=1 // pred_check_branch
      %18 = sbr.rel (0) target = $region9
    $region8: #{tpu_custom_call.1} parent=1 // pred_region
      _
    $region9: #{tpu_custom_call.1} parent=1 // pred_fallthru
      _
    // Predicated region
    $region10: #{tpu_custom_call.1} parent=1 // pred_check
      _
    $region11: #{tpu_custom_call.1} parent=1 // pred_check_branch
      %20 = sbr.rel (0) target = $region13
    $region12: #{tpu_custom_call.1} parent=1 // pred_region
      _
    $region13: #{tpu_custom_call.1} parent=1 // pred_fallthru
      _
    // Predicated region
    $region14: #{tpu_custom_call.1} parent=1 // pred_check
      _
    $region15: #{tpu_custom_call.1} parent=1 // pred_check_branch
      %22 = sbr.rel (0) target = $region17
    $region16: #{tpu_custom_call.1} parent=1 // pred_region
      _
    $region17: #{tpu_custom_call.1} parent=1 // pred_fallthru
      _
    // Predicated region
    $region18: #{tpu_custom_call.1} parent=1 // pred_check
      _
    $region19: #{tpu_custom_call.1} parent=1 // pred_check_branch
      %24 = sbr.rel (0) target = $region21
    $region20: #{tpu_custom_call.1} parent=1 // pred_region
      _
    $region21: #{tpu_custom_call.1} parent=1 // pred_fallthru
      _
    // Predicated region
    $region22: #{tpu_custom_call.1} parent=1 // pred_check
      _
    $region23: #{tpu_custom_call.1} parent=1 // pred_check_branch
      %26 = sbr.rel (0) target = $region25
    $region24: #{tpu_custom_call.1} parent=1 // pred_region
      _
    $region25: #{tpu_custom_call.1} parent=1 // pred_fallthru
      _
    // Predicated region
    $region26: #{tpu_custom_call.1} parent=1 // pred_check
      _
    $region27: #{tpu_custom_call.1} parent=1 // pred_check_branch
      %28 = sbr.rel (0) target = $region29
    $region28: #{tpu_custom_call.1} parent=1 // pred_region
      _
    $region29: #{tpu_custom_call.1} parent=1 // pred_fallthru
      _
    // Predicated region
    $region30: #{tpu_custom_call.1} parent=1 // pred_check
      _
    $region31: #{tpu_custom_call.1} parent=1 // pred_check_branch
      %30 = sbr.rel (0) target = $region33
    $region32: #{tpu_custom_call.1} parent=1 // pred_region
      _
    $region33: #{tpu_custom_call.1} parent=1 // pred_fallthru
      _
    // Predicated region
    $region34: #{tpu_custom_call.1} parent=1 // pred_check
      _
    $region35: #{tpu_custom_call.1} parent=1 // pred_check_branch
      %32 = sbr.rel (0) target = $region37
    $region36: #{tpu_custom_call.1} parent=1 // pred_region
      _
    $region37: #{tpu_custom_call.1} parent=1 // pred_fallthru
      _
    %v34 = vld [vmem:[%s1] sm:$0xf]
    %v35 = vld [vmem:[%s1 + $0x4] sm:$0xf]
    %v36 = vld [vmem:[%s4] sm:$0xf]
    %v37 = vld [vmem:[%s4 + $0x4] sm:$0xf]
    %v38 = vld [vmem:[%s4 + $0x8] sm:$0xf]
    %v39 = vld [vmem:[%s4 + $0xc] sm:$0xf]
    %v40 = vld [vmem:[%s2] sm:$0xf]
    %v41 = vld [vmem:[%s2 + $0x4] sm:$0xf]
    %v42 = vld [vmem:[%s2 + $0x8] sm:$0xf]
    %v43 = vld [vmem:[%s2 + $0xc] sm:$0xf]
    %v44 = vld [vmem:[%s5] sm:$0xf]
    %v45 = vld [vmem:[%s5 + $0x4] sm:$0xf]
    %v46 = vld [vmem:[%s5 + $0x8] sm:$0xf]
    %v47 = vld [vmem:[%s5 + $0xc] sm:$0xf]
    %v48 = vld [vmem:[%s3] sm:$0x1]
    %v49 = vld [vmem:[%s6] sm:$0x1]
    %v50 = vld [vmem:[%s0] sm:$0xff]
    %v51 = vld [vmem:[%s0 + $0x8] sm:$0xff]
    %v52 = vld [vmem:[%s0 + $0x10] sm:$0xff]
    %v53 = vld [vmem:[%s0 + $0x18] sm:$0xff]
    %v54 = vld [vmem:[%s0 + $0x20] sm:$0xff]
    %v55 = vld [vmem:[%s0 + $0x28] sm:$0xff]
    %v56 = vld [vmem:[%s0 + $0x30] sm:$0xff]
    %v57 = vld [vmem:[%s0 + $0x38] sm:$0xff]
    %v58 = vpack.c.bf16 %v51, %v50
    %v59 = vpack.c.bf16 %v53, %v52
    %v60 = vpack.c.bf16 %v55, %v54
    %v61 = vpack.c.bf16 %v57, %v56
    %v63 = vlaneseq
    %v64 = vshrl.u32 %v63, 7
    %v65 = vsub.s32 0, %v64
    %v66 = vrot.slane %v48, %v65
    %v70 = vunpack.c.l.b16 %v34
    %v71 = vunpack.c.l.b16 %v35
    %v72 = vpack.c.b16 %v71, %v70
    %vm74 = vcmask 130048
    %v76 = vsel %vm74, %v58, 0
    %v79 = vsel %vm74, %v59, 0
    %v82 = vsel %vm74, %v60, 0
    %v85 = vsel %vm74, %v61, 0
    %87 = vmatprep.subr.bf16.mxu0 0
    %88 = vmatpush1.bf16.msra.mxu0 %v72
    %89 = vmatprep.subr.bf16.mxu0 0
    %90 = vmatpush1.bf16.msra.mxu0 0
    %91 = vmatprep.subr.bf16.mxu0 0
    %92 = vmatpush1.bf16.msra.mxu0 0
    %93 = vmatprep.subr.bf16.mxu0 0
    %94 = vmatpush1.bf16.msra.mxu0 0
    %95 = vmatprep.subr.bf16.mxu0 0
    %96 = vmatpush1.bf16.msra.mxu0 0
    %97 = vmatprep.subr.bf16.mxu0 0
    %98 = vmatpush1.bf16.msra.mxu0 0
    %99 = vmatprep.subr.bf16.mxu0 0
    %100 = vmatpush1.bf16.msra.mxu0 0
    %101 = vmatprep.subr.bf16.mxu0 0
    %102 = vmatpush1.bf16.msra.mxu0 0
    %103 = vmatprep.subr.bf16.mxu0 0
    %104 = vmatpush1.bf16.msra.mxu0 0
    %105 = vmatprep.subr.bf16.mxu0 0
    %106 = vmatpush1.bf16.msra.mxu0 0
    %107 = vmatprep.subr.bf16.mxu0 0
    %108 = vmatpush1.bf16.msra.mxu0 0
    %109 = vmatprep.subr.bf16.mxu0 0
    %110 = vmatpush1.bf16.msra.mxu0 0
    %111 = vmatprep.subr.bf16.mxu0 0
    %112 = vmatpush1.bf16.msra.mxu0 0
    %113 = vmatprep.subr.bf16.mxu0 0
    %114 = vmatpush1.bf16.msra.mxu0 0
    %115 = vmatprep.subr.bf16.mxu0 0
    %116 = vmatpush1.bf16.msra.mxu0 0
    %117 = vmatprep.subr.bf16.mxu0 0
    %118 = vmatpush1.bf16.msra.mxu0 0
    %119 = vmatprep.mubr.bf16.mxu0 0
    %120 = vmatmul.mubr.bf16.gmra.mrb[0].mxu0 %v76
    %v121 = vpop.f32.mrb[0].mxu0
    %v122 = vadd.f32 %v66, %v121
    %v123 = vpop.f32.mrb[0].mxu0
    %v124 = vpop.f32.mrb[0].mxu0
    %v125 = vadd.f32 %v66, %v124
    %v126 = vpop.f32.mrb[0].mxu0
    %127 = vmatprep.mubr.bf16.mxu0 0
    %128 = vmatmul.mubr.bf16.gmra.mrb[0].mxu0 %v79
    %v129 = vpop.f32.mrb[0].mxu0
    %v130 = vadd.f32 %v66, %v129
    %v131 = vpop.f32.mrb[0].mxu0
    %v132 = vpop.f32.mrb[0].mxu0
    %v133 = vadd.f32 %v66, %v132
    %v134 = vpop.f32.mrb[0].mxu0
    %135 = vmatprep.mubr.bf16.mxu0 0
    %136 = vmatmul.mubr.bf16.gmra.mrb[0].mxu0 %v82
    %v137 = vpop.f32.mrb[0].mxu0
    %v138 = vadd.f32 %v66, %v137
    %v139 = vpop.f32.mrb[0].mxu0
    %v140 = vpop.f32.mrb[0].mxu0
    %v141 = vadd.f32 %v66, %v140
    %v142 = vpop.f32.mrb[0].mxu0
    %143 = vmatprep.mubr.bf16.mxu0 0
    %144 = vmatmul.mubr.bf16.gmra.mrb[0].mxu0 %v85
    %v145 = vpop.f32.mrb[0].mxu0
    %v146 = vadd.f32 %v66, %v145
    %v147 = vpop.f32.mrb[0].mxu0
    %v148 = vpop.f32.mrb[0].mxu0
    %v149 = vadd.f32 %v66, %v148
    %v150 = vpop.f32.mrb[0].mxu0
    %151 = vdwg.mxu0
    %v153 = vlaneseq
    %v154 = vshrl.u32 %v153, 7
    %v155 = vsub.s32 0, %v154
    %v156 = vrot.slane %v49, %v155
    %v162 = vunpack.c.l.b16 %v40
    %v163 = vunpack.c.l.b16 %v41
    %v164 = vunpack.c.l.b16 %v42
    %v165 = vunpack.c.l.b16 %v43
    %v166 = vpack.c.b16 %v163, %v162
    %v167 = vpack.c.b16 %v165, %v164
    %vm170 = vcmask 261120
    %v172 = vsel %vm170, 0, 0
    %174 = vmatprep.subr.bf16.mxu0 0
    %175 = vmatpush1.bf16.msra.mxu0 %v166
    %176 = vmatprep.subr.bf16.mxu0 0
    %177 = vmatpush1.bf16.msra.mxu0 %v167
    %178 = vmatprep.subr.bf16.mxu0 0
    %179 = vmatpush1.bf16.msra.mxu0 0
    %180 = vmatprep.subr.bf16.mxu0 0
    %181 = vmatpush1.bf16.msra.mxu0 0
    %182 = vmatprep.subr.bf16.mxu0 0
    %183 = vmatpush1.bf16.msra.mxu0 0
    %184 = vmatprep.subr.bf16.mxu0 0
    %185 = vmatpush1.bf16.msra.mxu0 0
    %186 = vmatprep.subr.bf16.mxu0 0
    %187 = vmatpush1.bf16.msra.mxu0 0
    %188 = vmatprep.subr.bf16.mxu0 0
    %189 = vmatpush1.bf16.msra.mxu0 0
    %190 = vmatprep.subr.bf16.mxu0 0
    %191 = vmatpush1.bf16.msra.mxu0 0
    %192 = vmatprep.subr.bf16.mxu0 0
    %193 = vmatpush1.bf16.msra.mxu0 0
    %194 = vmatprep.subr.bf16.mxu0 0
    %195 = vmatpush1.bf16.msra.mxu0 0
    %196 = vmatprep.subr.bf16.mxu0 0
    %197 = vmatpush1.bf16.msra.mxu0 0
    %198 = vmatprep.subr.bf16.mxu0 0
    %199 = vmatpush1.bf16.msra.mxu0 0
    %200 = vmatprep.subr.bf16.mxu0 0
    %201 = vmatpush1.bf16.msra.mxu0 0
    %202 = vmatprep.subr.bf16.mxu0 0
    %203 = vmatpush1.bf16.msra.mxu0 0
    %204 = vmatprep.subr.bf16.mxu0 0
    %205 = vmatpush1.bf16.msra.mxu0 0
    %206 = vmatprep.mubr.bf16.mxu0 0
    %207 = vmatmul.mubr.bf16.gmra.mrb[0].mxu0 %v172
    %v208 = vpop.f32.mrb[0].mxu0
    %v209 = vadd.f32 0.0, %v208
    %v210 = vpop.f32.mrb[0].mxu0
    %v211 = vpop.f32.mrb[0].mxu0
    %v212 = vpop.f32.mrb[0].mxu0
    %213 = vdwg.mxu0
    %v214 = vadd.f32 %v122, %v209
    %v215 = vxor.u32 %v214, 2147483648
    %v216 = vmul.f32 %v215, 1.442695
    %v217 = vpow.pop %v216
    %v218 = vadd.f32 %v217, 1.0
    %v219 = vrcp.pop %v218
    %v220 = vmul.f32 1.0, %v219
    %v221 = vtanh.pop %v214
    %v222 = vmul.f32 %v220, 0.0
    %224 = vrot.lane.b32.xlu0 %v221, 32
    %v225 = vpop.permute.xlu0 %224
    %v227 = vmul.f32 %v220, %v225
    %229 = vrot.lane.b32.xlu0 %v227, 32
    %v230 = vpop.permute.xlu0 %229
    %v232 = vadd.f32 %v222, %v230
    %v233 = vtanh.pop %v232
    %235 = vrot.lane.b32.xlu0 %v233, 32
    %v236 = vpop.permute.xlu0 %235
    %v238 = vmul.f32 %v220, %v236
    %v239 = vpack.c.bf16 %v238, %v238
    %241 = vrot.lane.b32.xlu0 %v239, 64
    %v242 = vpop.permute.xlu0 %241
    %v247 = vunpack.c.l.b16 %v36
    %v248 = vunpack.c.l.b16 %v37
    %v249 = vunpack.c.l.b16 %v38
    %v250 = vunpack.c.l.b16 %v39
    %v251 = vpack.c.b16 %v248, %v247
    %v252 = vpack.c.b16 %v250, %v249
    %v256 = vsel %vm170, %v242, 0
    %258 = vmatprep.subr.bf16.mxu0 0
    %259 = vmatpush1.bf16.msra.mxu0 %v251
    %260 = vmatprep.subr.bf16.mxu0 0
    %261 = vmatpush1.bf16.msra.mxu0 %v252
    %262 = vmatprep.subr.bf16.mxu0 0
    %263 = vmatpush1.bf16.msra.mxu0 0
    %264 = vmatprep.subr.bf16.mxu0 0
    %265 = vmatpush1.bf16.msra.mxu0 0
    %266 = vmatprep.subr.bf16.mxu0 0
    %267 = vmatpush1.bf16.msra.mxu0 0
    %268 = vmatprep.subr.bf16.mxu0 0
    %269 = vmatpush1.bf16.msra.mxu0 0
    %270 = vmatprep.subr.bf16.mxu0 0
    %271 = vmatpush1.bf16.msra.mxu0 0
    %272 = vmatprep.subr.bf16.mxu0 0
    %273 = vmatpush1.bf16.msra.mxu0 0
    %274 = vmatprep.subr.bf16.mxu0 0
    %275 = vmatpush1.bf16.msra.mxu0 0
    %276 = vmatprep.subr.bf16.mxu0 0
    %277 = vmatpush1.bf16.msra.mxu0 0
    %278 = vmatprep.subr.bf16.mxu0 0
    %279 = vmatpush1.bf16.msra.mxu0 0
    %280 = vmatprep.subr.bf16.mxu0 0
    %281 = vmatpush1.bf16.msra.mxu0 0
    %282 = vmatprep.subr.bf16.mxu0 0
    %283 = vmatpush1.bf16.msra.mxu0 0
    %284 = vmatprep.subr.bf16.mxu0 0
    %285 = vmatpush1.bf16.msra.mxu0 0
    %286 = vmatprep.subr.bf16.mxu0 0
    %287 = vmatpush1.bf16.msra.mxu0 0
    %288 = vmatprep.subr.bf16.mxu0 0
    %289 = vmatpush1.bf16.msra.mxu0 0
    %290 = vmatprep.mubr.bf16.mxu0 0
    %291 = vmatmul.mubr.bf16.gmra.mrb[0].mxu0 %v256
    %v292 = vpop.f32.mrb[0].mxu0
    %v293 = vadd.f32 %v156, %v292
    %v294 = vpop.f32.mrb[0].mxu0
    %v295 = vpop.f32.mrb[0].mxu0
    %v296 = vpop.f32.mrb[0].mxu0
    %297 = vdwg.mxu0
    %v302 = vunpack.c.l.b16 %v44
    %v303 = vunpack.c.l.b16 %v45
    %v304 = vunpack.c.l.b16 %v46
    %v305 = vunpack.c.l.b16 %v47
    %v306 = vpack.c.b16 %v303, %v302
    %v307 = vpack.c.b16 %v305, %v304
    %310 = vmatprep.subr.bf16.mxu0 0
    %311 = vmatpush1.bf16.msra.mxu0 %v306
    %312 = vmatprep.subr.bf16.mxu0 0
    %313 = vmatpush1.bf16.msra.mxu0 %v307
    %314 = vmatprep.subr.bf16.mxu0 0
    %315 = vmatpush1.bf16.msra.mxu0 0
    %316 = vmatprep.subr.bf16.mxu0 0
    %317 = vmatpush1.bf16.msra.mxu0 0
    %318 = vmatprep.subr.bf16.mxu0 0
    %319 = vmatpush1.bf16.msra.mxu0 0
    %320 = vmatprep.subr.bf16.mxu0 0
    %321 = vmatpush1.bf16.msra.mxu0 0
    %322 = vmatprep.subr.bf16.mxu0 0
    %323 = vmatpush1.bf16.msra.mxu0 0
    %324 = vmatprep.subr.bf16.mxu0 0
    %325 = vmatpush1.bf16.msra.mxu0 0
    %326 = vmatprep.subr.bf16.mxu0 0
    %327 = vmatpush1.bf16.msra.mxu0 0
    %328 = vmatprep.subr.bf16.mxu0 0
    %329 = vmatpush1.bf16.msra.mxu0 0
    %330 = vmatprep.subr.bf16.mxu0 0
    %331 = vmatpush1.bf16.msra.mxu0 0
    %332 = vmatprep.subr.bf16.mxu0 0
    %333 = vmatpush1.bf16.msra.mxu0 0
    %334 = vmatprep.subr.bf16.mxu0 0
    %335 = vmatpush1.bf16.msra.mxu0 0
    %336 = vmatprep.subr.bf16.mxu0 0
    %337 = vmatpush1.bf16.msra.mxu0 0
    %338 = vmatprep.subr.bf16.mxu0 0
    %339 = vmatpush1.bf16.msra.mxu0 0
    %340 = vmatprep.subr.bf16.mxu0 0
    %341 = vmatpush1.bf16.msra.mxu0 0
    %342 = vmatprep.mubr.bf16.mxu0 0
    %343 = vmatmul.mubr.bf16.gmra.mrb[0].mxu0 %v172
    %v344 = vpop.f32.mrb[0].mxu0
    %v345 = vadd.f32 0.0, %v344
    %v346 = vpop.f32.mrb[0].mxu0
    %v347 = vpop.f32.mrb[0].mxu0
    %v348 = vpop.f32.mrb[0].mxu0
    %349 = vdwg.mxu0
    %v350 = vadd.f32 %v293, %v345
    %v351 = vxor.u32 %v350, 2147483648
    %v352 = vmul.f32 %v351, 1.442695
    %v353 = vpow.pop %v352
    %v354 = vadd.f32 %v353, 1.0
    %v355 = vrcp.pop %v354
    %v356 = vmul.f32 1.0, %v355
    %v357 = vtanh.pop %v350
    %v358 = vmul.f32 %v356, 0.0
    %360 = vrot.lane.b32.xlu0 %v357, 32
    %v361 = vpop.permute.xlu0 %360
    %v363 = vmul.f32 %v356, %v361
    %365 = vrot.lane.b32.xlu0 %v363, 32
    %v366 = vpop.permute.xlu0 %365
    %v368 = vadd.f32 %v358, %v366
    %v369 = vtanh.pop %v368
    %371 = vrot.lane.b32.xlu0 %v369, 32
    %v372 = vpop.permute.xlu0 %371
    %v374 = vmul.f32 %v356, %v372
    %375 = vmatprep.subr.bf16.mxu0 0
    %376 = vmatpush1.bf16.msra.mxu0 %v166
    %377 = vmatprep.subr.bf16.mxu0 0
    %378 = vmatpush1.bf16.msra.mxu0 %v167
    %379 = vmatprep.subr.bf16.mxu0 0
    %380 = vmatpush1.bf16.msra.mxu0 0
    %381 = vmatprep.subr.bf16.mxu0 0
    %382 = vmatpush1.bf16.msra.mxu0 0
    %383 = vmatprep.subr.bf16.mxu0 0
    %384 = vmatpush1.bf16.msra.mxu0 0
    %385 = vmatprep.subr.bf16.mxu0 0
    %386 = vmatpush1.bf16.msra.mxu0 0
    %387 = vmatprep.subr.bf16.mxu0 0
    %388 = vmatpush1.bf16.msra.mxu0 0
    %389 = vmatprep.subr.bf16.mxu0 0
    %390 = vmatpush1.bf16.msra.mxu0 0
    %391 = vmatprep.subr.bf16.mxu0 0
    %392 = vmatpush1.bf16.msra.mxu0 0
    %393 = vmatprep.subr.bf16.mxu0 0
    %394 = vmatpush1.bf16.msra.mxu0 0
    %395 = vmatprep.subr.bf16.mxu0 0
    %396 = vmatpush1.bf16.msra.mxu0 0
    %397 = vmatprep.subr.bf16.mxu0 0
    %398 = vmatpush1.bf16.msra.mxu0 0
    %399 = vmatprep.subr.bf16.mxu0 0
    %400 = vmatpush1.bf16.msra.mxu0 0
    %401 = vmatprep.subr.bf16.mxu0 0
    %402 = vmatpush1.bf16.msra.mxu0 0
    %403 = vmatprep.subr.bf16.mxu0 0
    %404 = vmatpush1.bf16.msra.mxu0 0
    %405 = vmatprep.subr.bf16.mxu0 0
    %406 = vmatpush1.bf16.msra.mxu0 0
    %407 = vmatprep.mubr.bf16.mxu0 0
    %408 = vmatmul.mubr.bf16.gmra.mrb[0].mxu0 %v256
    %v409 = vpop.f32.mrb[0].mxu0
    %v410 = vadd.f32 0.0, %v409
    %v411 = vpop.f32.mrb[0].mxu0
    %v412 = vpop.f32.mrb[0].mxu0
    %v413 = vpop.f32.mrb[0].mxu0
    %414 = vdwg.mxu0
    %v415 = vadd.f32 %v125, %v410
    %v416 = vxor.u32 %v415, 2147483648
    %v417 = vmul.f32 %v416, 1.442695
    %v418 = vpow.pop %v417
    %v419 = vadd.f32 %v418, 1.0
    %v420 = vrcp.pop %v419
    %v421 = vmul.f32 1.0, %v420
    %v422 = vtanh.pop %v415
    %v423 = vmul.f32 %v421, %v232
    %425 = vrot.lane.b32.xlu0 %v422, 32
    %v426 = vpop.permute.xlu0 %425
    %v428 = vmul.f32 %v421, %v426
    %430 = vrot.lane.b32.xlu0 %v428, 32
    %v431 = vpop.permute.xlu0 %430
    %v433 = vadd.f32 %v423, %v431
    %v434 = vtanh.pop %v433
    %436 = vrot.lane.b32.xlu0 %v434, 32
    %v437 = vpop.permute.xlu0 %436
    %v439 = vmul.f32 %v421, %v437
    %v440 = vpack.c.bf16 %v439, %v439
    %442 = vrot.lane.b32.xlu0 %v440, 64
    %v443 = vpop.permute.xlu0 %442
    %v445 = vsel %vm170, %v443, 0
    %447 = vmatprep.subr.bf16.mxu0 0
    %448 = vmatpush1.bf16.msra.mxu0 %v251
    %449 = vmatprep.subr.bf16.mxu0 0
    %450 = vmatpush1.bf16.msra.mxu0 %v252
    %451 = vmatprep.subr.bf16.mxu0 0
    %452 = vmatpush1.bf16.msra.mxu0 0
    %453 = vmatprep.subr.bf16.mxu0 0
    %454 = vmatpush1.bf16.msra.mxu0 0
    %455 = vmatprep.subr.bf16.mxu0 0
    %456 = vmatpush1.bf16.msra.mxu0 0
    %457 = vmatprep.subr.bf16.mxu0 0
    %458 = vmatpush1.bf16.msra.mxu0 0
    %459 = vmatprep.subr.bf16.mxu0 0
    %460 = vmatpush1.bf16.msra.mxu0 0
    %461 = vmatprep.subr.bf16.mxu0 0
    %462 = vmatpush1.bf16.msra.mxu0 0
    %463 = vmatprep.subr.bf16.mxu0 0
    %464 = vmatpush1.bf16.msra.mxu0 0
    %465 = vmatprep.subr.bf16.mxu0 0
    %466 = vmatpush1.bf16.msra.mxu0 0
    %467 = vmatprep.subr.bf16.mxu0 0
    %468 = vmatpush1.bf16.msra.mxu0 0
    %469 = vmatprep.subr.bf16.mxu0 0
    %470 = vmatpush1.bf16.msra.mxu0 0
    %471 = vmatprep.subr.bf16.mxu0 0
    %472 = vmatpush1.bf16.msra.mxu0 0
    %473 = vmatprep.subr.bf16.mxu0 0
    %474 = vmatpush1.bf16.msra.mxu0 0
    %475 = vmatprep.subr.bf16.mxu0 0
    %476 = vmatpush1.bf16.msra.mxu0 0
    %477 = vmatprep.subr.bf16.mxu0 0
    %478 = vmatpush1.bf16.msra.mxu0 0
    %479 = vmatprep.mubr.bf16.mxu0 0
    %480 = vmatmul.mubr.bf16.gmra.mrb[0].mxu0 %v445
    %v481 = vpop.f32.mrb[0].mxu0
    %v482 = vadd.f32 %v156, %v481
    %v483 = vpop.f32.mrb[0].mxu0
    %v484 = vpop.f32.mrb[0].mxu0
    %v485 = vpop.f32.mrb[0].mxu0
    %486 = vdwg.mxu0
    %v487 = vpack.c.bf16 %v374, %v374
    %489 = vrot.lane.b32.xlu0 %v487, 64
    %v490 = vpop.permute.xlu0 %489
    %v492 = vsel %vm170, %v490, 0
    %494 = vmatprep.subr.bf16.mxu0 0
    %495 = vmatpush1.bf16.msra.mxu0 %v306
    %496 = vmatprep.subr.bf16.mxu0 0
    %497 = vmatpush1.bf16.msra.mxu0 %v307
    %498 = vmatprep.subr.bf16.mxu0 0
    %499 = vmatpush1.bf16.msra.mxu0 0
    %500 = vmatprep.subr.bf16.mxu0 0
    %501 = vmatpush1.bf16.msra.mxu0 0
    %502 = vmatprep.subr.bf16.mxu0 0
    %503 = vmatpush1.bf16.msra.mxu0 0
    %504 = vmatprep.subr.bf16.mxu0 0
    %505 = vmatpush1.bf16.msra.mxu0 0
    %506 = vmatprep.subr.bf16.mxu0 0
    %507 = vmatpush1.bf16.msra.mxu0 0
    %508 = vmatprep.subr.bf16.mxu0 0
    %509 = vmatpush1.bf16.msra.mxu0 0
    %510 = vmatprep.subr.bf16.mxu0 0
    %511 = vmatpush1.bf16.msra.mxu0 0
    %512 = vmatprep.subr.bf16.mxu0 0
    %513 = vmatpush1.bf16.msra.mxu0 0
    %514 = vmatprep.subr.bf16.mxu0 0
    %515 = vmatpush1.bf16.msra.mxu0 0
    %516 = vmatprep.subr.bf16.mxu0 0
    %517 = vmatpush1.bf16.msra.mxu0 0
    %518 = vmatprep.subr.bf16.mxu0 0
    %519 = vmatpush1.bf16.msra.mxu0 0
    %520 = vmatprep.subr.bf16.mxu0 0
    %521 = vmatpush1.bf16.msra.mxu0 0
    %522 = vmatprep.subr.bf16.mxu0 0
    %523 = vmatpush1.bf16.msra.mxu0 0
    %524 = vmatprep.subr.bf16.mxu0 0
    %525 = vmatpush1.bf16.msra.mxu0 0
    %526 = vmatprep.mubr.bf16.mxu0 0
    %527 = vmatmul.mubr.bf16.gmra.mrb[0].mxu0 %v492
    %v528 = vpop.f32.mrb[0].mxu0
    %v529 = vadd.f32 0.0, %v528
    %v530 = vpop.f32.mrb[0].mxu0
    %v531 = vpop.f32.mrb[0].mxu0
    %v532 = vpop.f32.mrb[0].mxu0
    %533 = vdwg.mxu0
    %v534 = vadd.f32 %v482, %v529
    %v535 = vxor.u32 %v534, 2147483648
    %v536 = vmul.f32 %v535, 1.442695
    %v537 = vpow.pop %v536
    %v538 = vadd.f32 %v537, 1.0
    %v539 = vrcp.pop %v538
    %v540 = vmul.f32 1.0, %v539
    %v541 = vtanh.pop %v534
    %v542 = vmul.f32 %v540, %v368
    %544 = vrot.lane.b32.xlu0 %v541, 32
    %v545 = vpop.permute.xlu0 %544
    %v547 = vmul.f32 %v540, %v545
    %549 = vrot.lane.b32.xlu0 %v547, 32
    %v550 = vpop.permute.xlu0 %549
    %v552 = vadd.f32 %v542, %v550
    %v553 = vtanh.pop %v552
    %555 = vrot.lane.b32.xlu0 %v553, 32
    %v556 = vpop.permute.xlu0 %555
    %v558 = vmul.f32 %v540, %v556
    %559 = vmatprep.subr.bf16.mxu0 0
    %560 = vmatpush1.bf16.msra.mxu0 %v166
    %561 = vmatprep.subr.bf16.mxu0 0
    %562 = vmatpush1.bf16.msra.mxu0 %v167
    %563 = vmatprep.subr.bf16.mxu0 0
    %564 = vmatpush1.bf16.msra.mxu0 0
    %565 = vmatprep.subr.bf16.mxu0 0
    %566 = vmatpush1.bf16.msra.mxu0 0
    %567 = vmatprep.subr.bf16.mxu0 0
    %568 = vmatpush1.bf16.msra.mxu0 0
    %569 = vmatprep.subr.bf16.mxu0 0
    %570 = vmatpush1.bf16.msra.mxu0 0
    %571 = vmatprep.subr.bf16.mxu0 0
    %572 = vmatpush1.bf16.msra.mxu0 0
    %573 = vmatprep.subr.bf16.mxu0 0
    %574 = vmatpush1.bf16.msra.mxu0 0
    %575 = vmatprep.subr.bf16.mxu0 0
    %576 = vmatpush1.bf16.msra.mxu0 0
    %577 = vmatprep.subr.bf16.mxu0 0
    %578 = vmatpush1.bf16.msra.mxu0 0
    %579 = vmatprep.subr.bf16.mxu0 0
    %580 = vmatpush1.bf16.msra.mxu0 0
    %581 = vmatprep.subr.bf16.mxu0 0
    %582 = vmatpush1.bf16.msra.mxu0 0
    %583 = vmatprep.subr.bf16.mxu0 0
    %584 = vmatpush1.bf16.msra.mxu0 0
    %585 = vmatprep.subr.bf16.mxu0 0
    %586 = vmatpush1.bf16.msra.mxu0 0
    %587 = vmatprep.subr.bf16.mxu0 0
    %588 = vmatpush1.bf16.msra.mxu0 0
    %589 = vmatprep.subr.bf16.mxu0 0
    %590 = vmatpush1.bf16.msra.mxu0 0
    %591 = vmatprep.mubr.bf16.mxu0 0
    %592 = vmatmul.mubr.bf16.gmra.mrb[0].mxu0 %v445
    %v593 = vpop.f32.mrb[0].mxu0
    %v594 = vadd.f32 0.0, %v593
    %v595 = vpop.f32.mrb[0].mxu0
    %v596 = vpop.f32.mrb[0].mxu0
    %v597 = vpop.f32.mrb[0].mxu0
    %598 = vdwg.mxu0
    %v599 = vadd.f32 %v130, %v594
    %v600 = vxor.u32 %v599, 2147483648
    %v601 = vmul.f32 %v600, 1.442695
    %v602 = vpow.pop %v601
    %v603 = vadd.f32 %v602, 1.0
    %v604 = vrcp.pop %v603
    %v605 = vmul.f32 1.0, %v604
    %v606 = vtanh.pop %v599
    %v607 = vmul.f32 %v605, %v433
    %609 = vrot.lane.b32.xlu0 %v606, 32
    %v610 = vpop.permute.xlu0 %609
    %v612 = vmul.f32 %v605, %v610
    %614 = vrot.lane.b32.xlu0 %v612, 32
    %v615 = vpop.permute.xlu0 %614
    %v617 = vadd.f32 %v607, %v615
    %v618 = vtanh.pop %v617
    %620 = vrot.lane.b32.xlu0 %v618, 32
    %v621 = vpop.permute.xlu0 %620
    %v623 = vmul.f32 %v605, %v621
    %v624 = vpack.c.bf16 %v623, %v623
    %626 = vrot.lane.b32.xlu0 %v624, 64
    %v627 = vpop.permute.xlu0 %626
    %v629 = vsel %vm170, %v627, 0
    %631 = vmatprep.subr.bf16.mxu0 0
    %632 = vmatpush1.bf16.msra.mxu0 %v251
    %633 = vmatprep.subr.bf16.mxu0 0
    %634 = vmatpush1.bf16.msra.mxu0 %v252
    %635 = vmatprep.subr.bf16.mxu0 0
    %636 = vmatpush1.bf16.msra.mxu0 0
    %637 = vmatprep.subr.bf16.mxu0 0
    %638 = vmatpush1.bf16.msra.mxu0 0
    %639 = vmatprep.subr.bf16.mxu0 0
    %640 = vmatpush1.bf16.msra.mxu0 0
    %641 = vmatprep.subr.bf16.mxu0 0
    %642 = vmatpush1.bf16.msra.mxu0 0
    %643 = vmatprep.subr.bf16.mxu0 0
    %644 = vmatpush1.bf16.msra.mxu0 0
    %645 = vmatprep.subr.bf16.mxu0 0
    %646 = vmatpush1.bf16.msra.mxu0 0
    %647 = vmatprep.subr.bf16.mxu0 0
    %648 = vmatpush1.bf16.msra.mxu0 0
    %649 = vmatprep.subr.bf16.mxu0 0
    %650 = vmatpush1.bf16.msra.mxu0 0
    %651 = vmatprep.subr.bf16.mxu0 0
    %652 = vmatpush1.bf16.msra.mxu0 0
    %653 = vmatprep.subr.bf16.mxu0 0
    %654 = vmatpush1.bf16.msra.mxu0 0
    %655 = vmatprep.subr.bf16.mxu0 0
    %656 = vmatpush1.bf16.msra.mxu0 0
    %657 = vmatprep.subr.bf16.mxu0 0
    %658 = vmatpush1.bf16.msra.mxu0 0
    %659 = vmatprep.subr.bf16.mxu0 0
    %660 = vmatpush1.bf16.msra.mxu0 0
    %661 = vmatprep.subr.bf16.mxu0 0
    %662 = vmatpush1.bf16.msra.mxu0 0
    %663 = vmatprep.mubr.bf16.mxu0 0
    %664 = vmatmul.mubr.bf16.gmra.mrb[0].mxu0 %v629
    %v665 = vpop.f32.mrb[0].mxu0
    %v666 = vadd.f32 %v156, %v665
    %v667 = vpop.f32.mrb[0].mxu0
    %v668 = vpop.f32.mrb[0].mxu0
    %v669 = vpop.f32.mrb[0].mxu0
    %670 = vdwg.mxu0
    %v671 = vpack.c.bf16 %v558, %v558
    %673 = vrot.lane.b32.xlu0 %v671, 64
    %v674 = vpop.permute.xlu0 %673
    %v676 = vsel %vm170, %v674, 0
    %678 = vmatprep.subr.bf16.mxu0 0
    %679 = vmatpush1.bf16.msra.mxu0 %v306
    %680 = vmatprep.subr.bf16.mxu0 0
    %681 = vmatpush1.bf16.msra.mxu0 %v307
    %682 = vmatprep.subr.bf16.mxu0 0
    %683 = vmatpush1.bf16.msra.mxu0 0
    %684 = vmatprep.subr.bf16.mxu0 0
    %685 = vmatpush1.bf16.msra.mxu0 0
    %686 = vmatprep.subr.bf16.mxu0 0
    %687 = vmatpush1.bf16.msra.mxu0 0
    %688 = vmatprep.subr.bf16.mxu0 0
    %689 = vmatpush1.bf16.msra.mxu0 0
    %690 = vmatprep.subr.bf16.mxu0 0
    %691 = vmatpush1.bf16.msra.mxu0 0
    %692 = vmatprep.subr.bf16.mxu0 0
    %693 = vmatpush1.bf16.msra.mxu0 0
    %694 = vmatprep.subr.bf16.mxu0 0
    %695 = vmatpush1.bf16.msra.mxu0 0
    %696 = vmatprep.subr.bf16.mxu0 0
    %697 = vmatpush1.bf16.msra.mxu0 0
    %698 = vmatprep.subr.bf16.mxu0 0
    %699 = vmatpush1.bf16.msra.mxu0 0
    %700 = vmatprep.subr.bf16.mxu0 0
    %701 = vmatpush1.bf16.msra.mxu0 0
    %702 = vmatprep.subr.bf16.mxu0 0
    %703 = vmatpush1.bf16.msra.mxu0 0
    %704 = vmatprep.subr.bf16.mxu0 0
    %705 = vmatpush1.bf16.msra.mxu0 0
    %706 = vmatprep.subr.bf16.mxu0 0
    %707 = vmatpush1.bf16.msra.mxu0 0
    %708 = vmatprep.subr.bf16.mxu0 0
    %709 = vmatpush1.bf16.msra.mxu0 0
    %710 = vmatprep.mubr.bf16.mxu0 0
    %711 = vmatmul.mubr.bf16.gmra.mrb[0].mxu0 %v676
    %v712 = vpop.f32.mrb[0].mxu0
    %v713 = vadd.f32 0.0, %v712
    %v714 = vpop.f32.mrb[0].mxu0
    %v715 = vpop.f32.mrb[0].mxu0
    %v716 = vpop.f32.mrb[0].mxu0
    %717 = vdwg.mxu0
    %v718 = vadd.f32 %v666, %v713
    %v719 = vxor.u32 %v718, 2147483648
    %v720 = vmul.f32 %v719, 1.442695
    %v721 = vpow.pop %v720
    %v722 = vadd.f32 %v721, 1.0
    %v723 = vrcp.pop %v722
    %v724 = vmul.f32 1.0, %v723
    %v725 = vtanh.pop %v718
    %v726 = vmul.f32 %v724, %v552
    %728 = vrot.lane.b32.xlu0 %v725, 32
    %v729 = vpop.permute.xlu0 %728
    %v731 = vmul.f32 %v724, %v729
    %733 = vrot.lane.b32.xlu0 %v731, 32
    %v734 = vpop.permute.xlu0 %733
    %v736 = vadd.f32 %v726, %v734
    %v737 = vtanh.pop %v736
    %739 = vrot.lane.b32.xlu0 %v737, 32
    %v740 = vpop.permute.xlu0 %739
    %v742 = vmul.f32 %v724, %v740
    %743 = vmatprep.subr.bf16.mxu0 0
    %744 = vmatpush1.bf16.msra.mxu0 %v166
    %745 = vmatprep.subr.bf16.mxu0 0
    %746 = vmatpush1.bf16.msra.mxu0 %v167
    %747 = vmatprep.subr.bf16.mxu0 0
    %748 = vmatpush1.bf16.msra.mxu0 0
    %749 = vmatprep.subr.bf16.mxu0 0
    %750 = vmatpush1.bf16.msra.mxu0 0
    %751 = vmatprep.subr.bf16.mxu0 0
    %752 = vmatpush1.bf16.msra.mxu0 0
    %753 = vmatprep.subr.bf16.mxu0 0
    %754 = vmatpush1.bf16.msra.mxu0 0
    %755 = vmatprep.subr.bf16.mxu0 0
    %756 = vmatpush1.bf16.msra.mxu0 0
    %757 = vmatprep.subr.bf16.mxu0 0
    %758 = vmatpush1.bf16.msra.mxu0 0
    %759 = vmatprep.subr.bf16.mxu0 0
    %760 = vmatpush1.bf16.msra.mxu0 0
    %761 = vmatprep.subr.bf16.mxu0 0
    %762 = vmatpush1.bf16.msra.mxu0 0
    %763 = vmatprep.subr.bf16.mxu0 0
    %764 = vmatpush1.bf16.msra.mxu0 0
    %765 = vmatprep.subr.bf16.mxu0 0
    %766 = vmatpush1.bf16.msra.mxu0 0
    %767 = vmatprep.subr.bf16.mxu0 0
    %768 = vmatpush1.bf16.msra.mxu0 0
    %769 = vmatprep.subr.bf16.mxu0 0
    %770 = vmatpush1.bf16.msra.mxu0 0
    %771 = vmatprep.subr.bf16.mxu0 0
    %772 = vmatpush1.bf16.msra.mxu0 0
    %773 = vmatprep.subr.bf16.mxu0 0
    %774 = vmatpush1.bf16.msra.mxu0 0
    %775 = vmatprep.mubr.bf16.mxu0 0
    %776 = vmatmul.mubr.bf16.gmra.mrb[0].mxu0 %v629
    %v777 = vpop.f32.mrb[0].mxu0
    %v778 = vadd.f32 0.0, %v777
    %v779 = vpop.f32.mrb[0].mxu0
    %v780 = vpop.f32.mrb[0].mxu0
    %v781 = vpop.f32.mrb[0].mxu0
    %782 = vdwg.mxu0
    %v783 = vadd.f32 %v133, %v778
    %v784 = vxor.u32 %v783, 2147483648
    %v785 = vmul.f32 %v784, 1.442695
    %v786 = vpow.pop %v785
    %v787 = vadd.f32 %v786, 1.0
    %v788 = vrcp.pop %v787
    %v789 = vmul.f32 1.0, %v788
    %v790 = vtanh.pop %v783
    %v791 = vmul.f32 %v789, %v617
    %793 = vrot.lane.b32.xlu0 %v790, 32
    %v794 = vpop.permute.xlu0 %793
    %v796 = vmul.f32 %v789, %v794
    %798 = vrot.lane.b32.xlu0 %v796, 32
    %v799 = vpop.permute.xlu0 %798
    %v801 = vadd.f32 %v791, %v799
    %v802 = vtanh.pop %v801
    %804 = vrot.lane.b32.xlu0 %v802, 32
    %v805 = vpop.permute.xlu0 %804
    %v807 = vmul.f32 %v789, %v805
    %v808 = vpack.c.bf16 %v807, %v807
    %810 = vrot.lane.b32.xlu0 %v808, 64
    %v811 = vpop.permute.xlu0 %810
    %v813 = vsel %vm170, %v811, 0
    %815 = vmatprep.subr.bf16.mxu0 0
    %816 = vmatpush1.bf16.msra.mxu0 %v251
    %817 = vmatprep.subr.bf16.mxu0 0
    %818 = vmatpush1.bf16.msra.mxu0 %v252
    %819 = vmatprep.subr.bf16.mxu0 0
    %820 = vmatpush1.bf16.msra.mxu0 0
    %821 = vmatprep.subr.bf16.mxu0 0
    %822 = vmatpush1.bf16.msra.mxu0 0
    %823 = vmatprep.subr.bf16.mxu0 0
    %824 = vmatpush1.bf16.msra.mxu0 0
    %825 = vmatprep.subr.bf16.mxu0 0
    %826 = vmatpush1.bf16.msra.mxu0 0
    %827 = vmatprep.subr.bf16.mxu0 0
    %828 = vmatpush1.bf16.msra.mxu0 0
    %829 = vmatprep.subr.bf16.mxu0 0
    %830 = vmatpush1.bf16.msra.mxu0 0
    %831 = vmatprep.subr.bf16.mxu0 0
    %832 = vmatpush1.bf16.msra.mxu0 0
    %833 = vmatprep.subr.bf16.mxu0 0
    %834 = vmatpush1.bf16.msra.mxu0 0
    %835 = vmatprep.subr.bf16.mxu0 0
    %836 = vmatpush1.bf16.msra.mxu0 0
    %837 = vmatprep.subr.bf16.mxu0 0
    %838 = vmatpush1.bf16.msra.mxu0 0
    %839 = vmatprep.subr.bf16.mxu0 0
    %840 = vmatpush1.bf16.msra.mxu0 0
    %841 = vmatprep.subr.bf16.mxu0 0
    %842 = vmatpush1.bf16.msra.mxu0 0
    %843 = vmatprep.subr.bf16.mxu0 0
    %844 = vmatpush1.bf16.msra.mxu0 0
    %845 = vmatprep.subr.bf16.mxu0 0
    %846 = vmatpush1.bf16.msra.mxu0 0
    %847 = vmatprep.mubr.bf16.mxu0 0
    %848 = vmatmul.mubr.bf16.gmra.mrb[0].mxu0 %v813
    %v849 = vpop.f32.mrb[0].mxu0
    %v850 = vadd.f32 %v156, %v849
    %v851 = vpop.f32.mrb[0].mxu0
    %v852 = vpop.f32.mrb[0].mxu0
    %v853 = vpop.f32.mrb[0].mxu0
    %854 = vdwg.mxu0
    %v855 = vpack.c.bf16 %v742, %v742
    %857 = vrot.lane.b32.xlu0 %v855, 64
    %v858 = vpop.permute.xlu0 %857
    %v860 = vsel %vm170, %v858, 0
    %862 = vmatprep.subr.bf16.mxu0 0
    %863 = vmatpush1.bf16.msra.mxu0 %v306
    %864 = vmatprep.subr.bf16.mxu0 0
    %865 = vmatpush1.bf16.msra.mxu0 %v307
    %866 = vmatprep.subr.bf16.mxu0 0
    %867 = vmatpush1.bf16.msra.mxu0 0
    %868 = vmatprep.subr.bf16.mxu0 0
    %869 = vmatpush1.bf16.msra.mxu0 0
    %870 = vmatprep.subr.bf16.mxu0 0
    %871 = vmatpush1.bf16.msra.mxu0 0
    %872 = vmatprep.subr.bf16.mxu0 0
    %873 = vmatpush1.bf16.msra.mxu0 0
    %874 = vmatprep.subr.bf16.mxu0 0
    %875 = vmatpush1.bf16.msra.mxu0 0
    %876 = vmatprep.subr.bf16.mxu0 0
    %877 = vmatpush1.bf16.msra.mxu0 0
    %878 = vmatprep.subr.bf16.mxu0 0
    %879 = vmatpush1.bf16.msra.mxu0 0
    %880 = vmatprep.subr.bf16.mxu0 0
    %881 = vmatpush1.bf16.msra.mxu0 0
    %882 = vmatprep.subr.bf16.mxu0 0
    %883 = vmatpush1.bf16.msra.mxu0 0
    %884 = vmatprep.subr.bf16.mxu0 0
    %885 = vmatpush1.bf16.msra.mxu0 0
    %886 = vmatprep.subr.bf16.mxu0 0
    %887 = vmatpush1.bf16.msra.mxu0 0
    %888 = vmatprep.subr.bf16.mxu0 0
    %889 = vmatpush1.bf16.msra.mxu0 0
    %890 = vmatprep.subr.bf16.mxu0 0
    %891 = vmatpush1.bf16.msra.mxu0 0
    %892 = vmatprep.subr.bf16.mxu0 0
    %893 = vmatpush1.bf16.msra.mxu0 0
    %894 = vmatprep.mubr.bf16.mxu0 0
    %895 = vmatmul.mubr.bf16.gmra.mrb[0].mxu0 %v860
    %v896 = vpop.f32.mrb[0].mxu0
    %v897 = vadd.f32 0.0, %v896
    %v898 = vpop.f32.mrb[0].mxu0
    %v899 = vpop.f32.mrb[0].mxu0
    %v900 = vpop.f32.mrb[0].mxu0
    %901 = vdwg.mxu0
    %v902 = vadd.f32 %v850, %v897
    %v903 = vxor.u32 %v902, 2147483648
    %v904 = vmul.f32 %v903, 1.442695
    %v905 = vpow.pop %v904
    %v906 = vadd.f32 %v905, 1.0
    %v907 = vrcp.pop %v906
    %v908 = vmul.f32 1.0, %v907
    %v909 = vtanh.pop %v902
    %v910 = vmul.f32 %v908, %v736
    %912 = vrot.lane.b32.xlu0 %v909, 32
    %v913 = vpop.permute.xlu0 %912
    %v915 = vmul.f32 %v908, %v913
    %917 = vrot.lane.b32.xlu0 %v915, 32
    %v918 = vpop.permute.xlu0 %917
    %v920 = vadd.f32 %v910, %v918
    %v921 = vtanh.pop %v920
    %923 = vrot.lane.b32.xlu0 %v921, 32
    %v924 = vpop.permute.xlu0 %923
    %v926 = vmul.f32 %v908, %v924
    %927 = vmatprep.subr.bf16.mxu0 0
    %928 = vmatpush1.bf16.msra.mxu0 %v166
    %929 = vmatprep.subr.bf16.mxu0 0
    %930 = vmatpush1.bf16.msra.mxu0 %v167
    %931 = vmatprep.subr.bf16.mxu0 0
    %932 = vmatpush1.bf16.msra.mxu0 0
    %933 = vmatprep.subr.bf16.mxu0 0
    %934 = vmatpush1.bf16.msra.mxu0 0
    %935 = vmatprep.subr.bf16.mxu0 0
    %936 = vmatpush1.bf16.msra.mxu0 0
    %937 = vmatprep.subr.bf16.mxu0 0
    %938 = vmatpush1.bf16.msra.mxu0 0
    %939 = vmatprep.subr.bf16.mxu0 0
    %940 = vmatpush1.bf16.msra.mxu0 0
    %941 = vmatprep.subr.bf16.mxu0 0
    %942 = vmatpush1.bf16.msra.mxu0 0
    %943 = vmatprep.subr.bf16.mxu0 0
    %944 = vmatpush1.bf16.msra.mxu0 0
    %945 = vmatprep.subr.bf16.mxu0 0
    %946 = vmatpush1.bf16.msra.mxu0 0
    %947 = vmatprep.subr.bf16.mxu0 0
    %948 = vmatpush1.bf16.msra.mxu0 0
    %949 = vmatprep.subr.bf16.mxu0 0
    %950 = vmatpush1.bf16.msra.mxu0 0
    %951 = vmatprep.subr.bf16.mxu0 0
    %952 = vmatpush1.bf16.msra.mxu0 0
    %953 = vmatprep.subr.bf16.mxu0 0
    %954 = vmatpush1.bf16.msra.mxu0 0
    %955 = vmatprep.subr.bf16.mxu0 0
    %956 = vmatpush1.bf16.msra.mxu0 0
    %957 = vmatprep.subr.bf16.mxu0 0
    %958 = vmatpush1.bf16.msra.mxu0 0
    %959 = vmatprep.mubr.bf16.mxu0 0
    %960 = vmatmul.mubr.bf16.gmra.mrb[0].mxu0 %v813
    %v961 = vpop.f32.mrb[0].mxu0
    %v962 = vadd.f32 0.0, %v961
    %v963 = vpop.f32.mrb[0].mxu0
    %v964 = vpop.f32.mrb[0].mxu0
    %v965 = vpop.f32.mrb[0].mxu0
    %966 = vdwg.mxu0
    %v967 = vadd.f32 %v138, %v962
    %v968 = vxor.u32 %v967, 2147483648
    %v969 = vmul.f32 %v968, 1.442695
    %v970 = vpow.pop %v969
    %v971 = vadd.f32 %v970, 1.0
    %v972 = vrcp.pop %v971
    %v973 = vmul.f32 1.0, %v972
    %v974 = vtanh.pop %v967
    %v975 = vmul.f32 %v973, %v801
    %977 = vrot.lane.b32.xlu0 %v974, 32
    %v978 = vpop.permute.xlu0 %977
    %v980 = vmul.f32 %v973, %v978
    %982 = vrot.lane.b32.xlu0 %v980, 32
    %v983 = vpop.permute.xlu0 %982
    %v985 = vadd.f32 %v975, %v983
    %v986 = vtanh.pop %v985
    %988 = vrot.lane.b32.xlu0 %v986, 32
    %v989 = vpop.permute.xlu0 %988
    %v991 = vmul.f32 %v973, %v989
    %v992 = vpack.c.bf16 %v991, %v991
    %994 = vrot.lane.b32.xlu0 %v992, 64
    %v995 = vpop.permute.xlu0 %994
    %v997 = vsel %vm170, %v995, 0
    %999 = vmatprep.subr.bf16.mxu0 0
    %1000 = vmatpush1.bf16.msra.mxu0 %v251
    %1001 = vmatprep.subr.bf16.mxu0 0
    %1002 = vmatpush1.bf16.msra.mxu0 %v252
    %1003 = vmatprep.subr.bf16.mxu0 0
    %1004 = vmatpush1.bf16.msra.mxu0 0
    %1005 = vmatprep.subr.bf16.mxu0 0
    %1006 = vmatpush1.bf16.msra.mxu0 0
    %1007 = vmatprep.subr.bf16.mxu0 0
    %1008 = vmatpush1.bf16.msra.mxu0 0
    %1009 = vmatprep.subr.bf16.mxu0 0
    %1010 = vmatpush1.bf16.msra.mxu0 0
    %1011 = vmatprep.subr.bf16.mxu0 0
    %1012 = vmatpush1.bf16.msra.mxu0 0
    %1013 = vmatprep.subr.bf16.mxu0 0
    %1014 = vmatpush1.bf16.msra.mxu0 0
    %1015 = vmatprep.subr.bf16.mxu0 0
    %1016 = vmatpush1.bf16.msra.mxu0 0
    %1017 = vmatprep.subr.bf16.mxu0 0
    %1018 = vmatpush1.bf16.msra.mxu0 0
    %1019 = vmatprep.subr.bf16.mxu0 0
    %1020 = vmatpush1.bf16.msra.mxu0 0
    %1021 = vmatprep.subr.bf16.mxu0 0
    %1022 = vmatpush1.bf16.msra.mxu0 0
    %1023 = vmatprep.subr.bf16.mxu0 0
    %1024 = vmatpush1.bf16.msra.mxu0 0
    %1025 = vmatprep.subr.bf16.mxu0 0
    %1026 = vmatpush1.bf16.msra.mxu0 0
    %1027 = vmatprep.subr.bf16.mxu0 0
    %1028 = vmatpush1.bf16.msra.mxu0 0
    %1029 = vmatprep.subr.bf16.mxu0 0
    %1030 = vmatpush1.bf16.msra.mxu0 0
    %1031 = vmatprep.mubr.bf16.mxu0 0
    %1032 = vmatmul.mubr.bf16.gmra.mrb[0].mxu0 %v997
    %v1033 = vpop.f32.mrb[0].mxu0
    %v1034 = vadd.f32 %v156, %v1033
    %v1035 = vpop.f32.mrb[0].mxu0
    %v1036 = vpop.f32.mrb[0].mxu0
    %v1037 = vpop.f32.mrb[0].mxu0
    %1038 = vdwg.mxu0
    %v1039 = vpack.c.bf16 %v926, %v926
    %1041 = vrot.lane.b32.xlu0 %v1039, 64
    %v1042 = vpop.permute.xlu0 %1041
    %v1044 = vsel %vm170, %v1042, 0
    %1046 = vmatprep.subr.bf16.mxu0 0
    %1047 = vmatpush1.bf16.msra.mxu0 %v306
    %1048 = vmatprep.subr.bf16.mxu0 0
    %1049 = vmatpush1.bf16.msra.mxu0 %v307
    %1050 = vmatprep.subr.bf16.mxu0 0
    %1051 = vmatpush1.bf16.msra.mxu0 0
    %1052 = vmatprep.subr.bf16.mxu0 0
    %1053 = vmatpush1.bf16.msra.mxu0 0
    %1054 = vmatprep.subr.bf16.mxu0 0
    %1055 = vmatpush1.bf16.msra.mxu0 0
    %1056 = vmatprep.subr.bf16.mxu0 0
    %1057 = vmatpush1.bf16.msra.mxu0 0
    %1058 = vmatprep.subr.bf16.mxu0 0
    %1059 = vmatpush1.bf16.msra.mxu0 0
    %1060 = vmatprep.subr.bf16.mxu0 0
    %1061 = vmatpush1.bf16.msra.mxu0 0
    %1062 = vmatprep.subr.bf16.mxu0 0
    %1063 = vmatpush1.bf16.msra.mxu0 0
    %1064 = vmatprep.subr.bf16.mxu0 0
    %1065 = vmatpush1.bf16.msra.mxu0 0
    %1066 = vmatprep.subr.bf16.mxu0 0
    %1067 = vmatpush1.bf16.msra.mxu0 0
    %1068 = vmatprep.subr.bf16.mxu0 0
    %1069 = vmatpush1.bf16.msra.mxu0 0
    %1070 = vmatprep.subr.bf16.mxu0 0
    %1071 = vmatpush1.bf16.msra.mxu0 0
    %1072 = vmatprep.subr.bf16.mxu0 0
    %1073 = vmatpush1.bf16.msra.mxu0 0
    %1074 = vmatprep.subr.bf16.mxu0 0
    %1075 = vmatpush1.bf16.msra.mxu0 0
    %1076 = vmatprep.subr.bf16.mxu0 0
    %1077 = vmatpush1.bf16.msra.mxu0 0
    %1078 = vmatprep.mubr.bf16.mxu0 0
    %1079 = vmatmul.mubr.bf16.gmra.mrb[0].mxu0 %v1044
    %v1080 = vpop.f32.mrb[0].mxu0
    %v1081 = vadd.f32 0.0, %v1080
    %v1082 = vpop.f32.mrb[0].mxu0
    %v1083 = vpop.f32.mrb[0].mxu0
    %v1084 = vpop.f32.mrb[0].mxu0
    %1085 = vdwg.mxu0
    %v1086 = vadd.f32 %v1034, %v1081
    %v1087 = vxor.u32 %v1086, 2147483648
    %v1088 = vmul.f32 %v1087, 1.442695
    %v1089 = vpow.pop %v1088
    %v1090 = vadd.f32 %v1089, 1.0
    %v1091 = vrcp.pop %v1090
    %v1092 = vmul.f32 1.0, %v1091
    %v1093 = vtanh.pop %v1086
    %v1094 = vmul.f32 %v1092, %v920
    %1096 = vrot.lane.b32.xlu0 %v1093, 32
    %v1097 = vpop.permute.xlu0 %1096
    %v1099 = vmul.f32 %v1092, %v1097
    %1101 = vrot.lane.b32.xlu0 %v1099, 32
    %v1102 = vpop.permute.xlu0 %1101
    %v1104 = vadd.f32 %v1094, %v1102
    %v1105 = vtanh.pop %v1104
    %1107 = vrot.lane.b32.xlu0 %v1105, 32
    %v1108 = vpop.permute.xlu0 %1107
    %v1110 = vmul.f32 %v1092, %v1108
    %1111 = vmatprep.subr.bf16.mxu0 0
    %1112 = vmatpush1.bf16.msra.mxu0 %v166
    %1113 = vmatprep.subr.bf16.mxu0 0
    %1114 = vmatpush1.bf16.msra.mxu0 %v167
    %1115 = vmatprep.subr.bf16.mxu0 0
    %1116 = vmatpush1.bf16.msra.mxu0 0
    %1117 = vmatprep.subr.bf16.mxu0 0
    %1118 = vmatpush1.bf16.msra.mxu0 0
    %1119 = vmatprep.subr.bf16.mxu0 0
    %1120 = vmatpush1.bf16.msra.mxu0 0
    %1121 = vmatprep.subr.bf16.mxu0 0
    %1122 = vmatpush1.bf16.msra.mxu0 0
    %1123 = vmatprep.subr.bf16.mxu0 0
    %1124 = vmatpush1.bf16.msra.mxu0 0
    %1125 = vmatprep.subr.bf16.mxu0 0
    %1126 = vmatpush1.bf16.msra.mxu0 0
    %1127 = vmatprep.subr.bf16.mxu0 0
    %1128 = vmatpush1.bf16.msra.mxu0 0
    %1129 = vmatprep.subr.bf16.mxu0 0
    %1130 = vmatpush1.bf16.msra.mxu0 0
    %1131 = vmatprep.subr.bf16.mxu0 0
    %1132 = vmatpush1.bf16.msra.mxu0 0
    %1133 = vmatprep.subr.bf16.mxu0 0
    %1134 = vmatpush1.bf16.msra.mxu0 0
    %1135 = vmatprep.subr.bf16.mxu0 0
    %1136 = vmatpush1.bf16.msra.mxu0 0
    %1137 = vmatprep.subr.bf16.mxu0 0
    %1138 = vmatpush1.bf16.msra.mxu0 0
    %1139 = vmatprep.subr.bf16.mxu0 0
    %1140 = vmatpush1.bf16.msra.mxu0 0
    %1141 = vmatprep.subr.bf16.mxu0 0
    %1142 = vmatpush1.bf16.msra.mxu0 0
    %1143 = vmatprep.mubr.bf16.mxu0 0
    %1144 = vmatmul.mubr.bf16.gmra.mrb[0].mxu0 %v997
    %v1145 = vpop.f32.mrb[0].mxu0
    %v1146 = vadd.f32 0.0, %v1145
    %v1147 = vpop.f32.mrb[0].mxu0
    %v1148 = vpop.f32.mrb[0].mxu0
    %v1149 = vpop.f32.mrb[0].mxu0
    %1150 = vdwg.mxu0
    %v1151 = vadd.f32 %v141, %v1146
    %v1152 = vxor.u32 %v1151, 2147483648
    %v1153 = vmul.f32 %v1152, 1.442695
    %v1154 = vpow.pop %v1153
    %v1155 = vadd.f32 %v1154, 1.0
    %v1156 = vrcp.pop %v1155
    %v1157 = vmul.f32 1.0, %v1156
    %v1158 = vtanh.pop %v1151
    %v1159 = vmul.f32 %v1157, %v985
    %1161 = vrot.lane.b32.xlu0 %v1158, 32
    %v1162 = vpop.permute.xlu0 %1161
    %v1164 = vmul.f32 %v1157, %v1162
    %1166 = vrot.lane.b32.xlu0 %v1164, 32
    %v1167 = vpop.permute.xlu0 %1166
    %v1169 = vadd.f32 %v1159, %v1167
    %v1170 = vtanh.pop %v1169
    %1172 = vrot.lane.b32.xlu0 %v1170, 32
    %v1173 = vpop.permute.xlu0 %1172
    %v1175 = vmul.f32 %v1157, %v1173
    %v1176 = vpack.c.bf16 %v1175, %v1175
    %1178 = vrot.lane.b32.xlu0 %v1176, 64
    %v1179 = vpop.permute.xlu0 %1178
    %v1181 = vsel %vm170, %v1179, 0
    %1183 = vmatprep.subr.bf16.mxu0 0
    %1184 = vmatpush1.bf16.msra.mxu0 %v251
    %1185 = vmatprep.subr.bf16.mxu0 0
    %1186 = vmatpush1.bf16.msra.mxu0 %v252
    %1187 = vmatprep.subr.bf16.mxu0 0
    %1188 = vmatpush1.bf16.msra.mxu0 0
    %1189 = vmatprep.subr.bf16.mxu0 0
    %1190 = vmatpush1.bf16.msra.mxu0 0
    %1191 = vmatprep.subr.bf16.mxu0 0
    %1192 = vmatpush1.bf16.msra.mxu0 0
    %1193 = vmatprep.subr.bf16.mxu0 0
    %1194 = vmatpush1.bf16.msra.mxu0 0
    %1195 = vmatprep.subr.bf16.mxu0 0
    %1196 = vmatpush1.bf16.msra.mxu0 0
    %1197 = vmatprep.subr.bf16.mxu0 0
    %1198 = vmatpush1.bf16.msra.mxu0 0
    %1199 = vmatprep.subr.bf16.mxu0 0
    %1200 = vmatpush1.bf16.msra.mxu0 0
    %1201 = vmatprep.subr.bf16.mxu0 0
    %1202 = vmatpush1.bf16.msra.mxu0 0
    %1203 = vmatprep.subr.bf16.mxu0 0
    %1204 = vmatpush1.bf16.msra.mxu0 0
    %1205 = vmatprep.subr.bf16.mxu0 0
    %1206 = vmatpush1.bf16.msra.mxu0 0
    %1207 = vmatprep.subr.bf16.mxu0 0
    %1208 = vmatpush1.bf16.msra.mxu0 0
    %1209 = vmatprep.subr.bf16.mxu0 0
    %1210 = vmatpush1.bf16.msra.mxu0 0
    %1211 = vmatprep.subr.bf16.mxu0 0
    %1212 = vmatpush1.bf16.msra.mxu0 0
    %1213 = vmatprep.subr.bf16.mxu0 0
    %1214 = vmatpush1.bf16.msra.mxu0 0
    %1215 = vmatprep.mubr.bf16.mxu0 0
    %1216 = vmatmul.mubr.bf16.gmra.mrb[0].mxu0 %v1181
    %v1217 = vpop.f32.mrb[0].mxu0
    %v1218 = vadd.f32 %v156, %v1217
    %v1219 = vpop.f32.mrb[0].mxu0
    %v1220 = vpop.f32.mrb[0].mxu0
    %v1221 = vpop.f32.mrb[0].mxu0
    %1222 = vdwg.mxu0
    %v1223 = vpack.c.bf16 %v1110, %v1110
    %1225 = vrot.lane.b32.xlu0 %v1223, 64
    %v1226 = vpop.permute.xlu0 %1225
    %v1228 = vsel %vm170, %v1226, 0
    %1230 = vmatprep.subr.bf16.mxu0 0
    %1231 = vmatpush1.bf16.msra.mxu0 %v306
    %1232 = vmatprep.subr.bf16.mxu0 0
    %1233 = vmatpush1.bf16.msra.mxu0 %v307
    %1234 = vmatprep.subr.bf16.mxu0 0
    %1235 = vmatpush1.bf16.msra.mxu0 0
    %1236 = vmatprep.subr.bf16.mxu0 0
    %1237 = vmatpush1.bf16.msra.mxu0 0
    %1238 = vmatprep.subr.bf16.mxu0 0
    %1239 = vmatpush1.bf16.msra.mxu0 0
    %1240 = vmatprep.subr.bf16.mxu0 0
    %1241 = vmatpush1.bf16.msra.mxu0 0
    %1242 = vmatprep.subr.bf16.mxu0 0
    %1243 = vmatpush1.bf16.msra.mxu0 0
    %1244 = vmatprep.subr.bf16.mxu0 0
    %1245 = vmatpush1.bf16.msra.mxu0 0
    %1246 = vmatprep.subr.bf16.mxu0 0
    %1247 = vmatpush1.bf16.msra.mxu0 0
    %1248 = vmatprep.subr.bf16.mxu0 0
    %1249 = vmatpush1.bf16.msra.mxu0 0
    %1250 = vmatprep.subr.bf16.mxu0 0
    %1251 = vmatpush1.bf16.msra.mxu0 0
    %1252 = vmatprep.subr.bf16.mxu0 0
    %1253 = vmatpush1.bf16.msra.mxu0 0
    %1254 = vmatprep.subr.bf16.mxu0 0
    %1255 = vmatpush1.bf16.msra.mxu0 0
    %1256 = vmatprep.subr.bf16.mxu0 0
    %1257 = vmatpush1.bf16.msra.mxu0 0
    %1258 = vmatprep.subr.bf16.mxu0 0
    %1259 = vmatpush1.bf16.msra.mxu0 0
    %1260 = vmatprep.subr.bf16.mxu0 0
    %1261 = vmatpush1.bf16.msra.mxu0 0
    %1262 = vmatprep.mubr.bf16.mxu0 0
    %1263 = vmatmul.mubr.bf16.gmra.mrb[0].mxu0 %v1228
    %v1264 = vpop.f32.mrb[0].mxu0
    %v1265 = vadd.f32 0.0, %v1264
    %v1266 = vpop.f32.mrb[0].mxu0
    %v1267 = vpop.f32.mrb[0].mxu0
    %v1268 = vpop.f32.mrb[0].mxu0
    %1269 = vdwg.mxu0
    %v1270 = vadd.f32 %v1218, %v1265
    %v1271 = vxor.u32 %v1270, 2147483648
    %v1272 = vmul.f32 %v1271, 1.442695
    %v1273 = vpow.pop %v1272
    %v1274 = vadd.f32 %v1273, 1.0
    %v1275 = vrcp.pop %v1274
    %v1276 = vmul.f32 1.0, %v1275
    %v1277 = vtanh.pop %v1270
    %v1278 = vmul.f32 %v1276, %v1104
    %1280 = vrot.lane.b32.xlu0 %v1277, 32
    %v1281 = vpop.permute.xlu0 %1280
    %v1283 = vmul.f32 %v1276, %v1281
    %1285 = vrot.lane.b32.xlu0 %v1283, 32
    %v1286 = vpop.permute.xlu0 %1285
    %v1288 = vadd.f32 %v1278, %v1286
    %v1289 = vtanh.pop %v1288
    %1291 = vrot.lane.b32.xlu0 %v1289, 32
    %v1292 = vpop.permute.xlu0 %1291
    %v1294 = vmul.f32 %v1276, %v1292
    %1295 = vmatprep.subr.bf16.mxu0 0
    %1296 = vmatpush1.bf16.msra.mxu0 %v166
    %1297 = vmatprep.subr.bf16.mxu0 0
    %1298 = vmatpush1.bf16.msra.mxu0 %v167
    %1299 = vmatprep.subr.bf16.mxu0 0
    %1300 = vmatpush1.bf16.msra.mxu0 0
    %1301 = vmatprep.subr.bf16.mxu0 0
    %1302 = vmatpush1.bf16.msra.mxu0 0
    %1303 = vmatprep.subr.bf16.mxu0 0
    %1304 = vmatpush1.bf16.msra.mxu0 0
    %1305 = vmatprep.subr.bf16.mxu0 0
    %1306 = vmatpush1.bf16.msra.mxu0 0
    %1307 = vmatprep.subr.bf16.mxu0 0
    %1308 = vmatpush1.bf16.msra.mxu0 0
    %1309 = vmatprep.subr.bf16.mxu0 0
    %1310 = vmatpush1.bf16.msra.mxu0 0
    %1311 = vmatprep.subr.bf16.mxu0 0
    %1312 = vmatpush1.bf16.msra.mxu0 0
    %1313 = vmatprep.subr.bf16.mxu0 0
    %1314 = vmatpush1.bf16.msra.mxu0 0
    %1315 = vmatprep.subr.bf16.mxu0 0
    %1316 = vmatpush1.bf16.msra.mxu0 0
    %1317 = vmatprep.subr.bf16.mxu0 0
    %1318 = vmatpush1.bf16.msra.mxu0 0
    %1319 = vmatprep.subr.bf16.mxu0 0
    %1320 = vmatpush1.bf16.msra.mxu0 0
    %1321 = vmatprep.subr.bf16.mxu0 0
    %1322 = vmatpush1.bf16.msra.mxu0 0
    %1323 = vmatprep.subr.bf16.mxu0 0
    %1324 = vmatpush1.bf16.msra.mxu0 0
    %1325 = vmatprep.subr.bf16.mxu0 0
    %1326 = vmatpush1.bf16.msra.mxu0 0
    %1327 = vmatprep.mubr.bf16.mxu0 0
    %1328 = vmatmul.mubr.bf16.gmra.mrb[0].mxu0 %v1181
    %v1329 = vpop.f32.mrb[0].mxu0
    %v1330 = vadd.f32 0.0, %v1329
    %v1331 = vpop.f32.mrb[0].mxu0
    %v1332 = vpop.f32.mrb[0].mxu0
    %v1333 = vpop.f32.mrb[0].mxu0
    %1334 = vdwg.mxu0
    %v1335 = vadd.f32 %v146, %v1330
    %v1336 = vxor.u32 %v1335, 2147483648
    %v1337 = vmul.f32 %v1336, 1.442695
    %v1338 = vpow.pop %v1337
    %v1339 = vadd.f32 %v1338, 1.0
    %v1340 = vrcp.pop %v1339
    %v1341 = vmul.f32 1.0, %v1340
    %v1342 = vtanh.pop %v1335
    %v1343 = vmul.f32 %v1341, %v1169
    %1345 = vrot.lane.b32.xlu0 %v1342, 32
    %v1346 = vpop.permute.xlu0 %1345
    %v1348 = vmul.f32 %v1341, %v1346
    %1350 = vrot.lane.b32.xlu0 %v1348, 32
    %v1351 = vpop.permute.xlu0 %1350
    %v1353 = vadd.f32 %v1343, %v1351
    %v1354 = vtanh.pop %v1353
    %1356 = vrot.lane.b32.xlu0 %v1354, 32
    %v1357 = vpop.permute.xlu0 %1356
    %v1359 = vmul.f32 %v1341, %v1357
    %v1360 = vpack.c.bf16 %v1359, %v1359
    %1362 = vrot.lane.b32.xlu0 %v1360, 64
    %v1363 = vpop.permute.xlu0 %1362
    %v1365 = vsel %vm170, %v1363, 0
    %1367 = vmatprep.subr.bf16.mxu0 0
    %1368 = vmatpush1.bf16.msra.mxu0 %v251
    %1369 = vmatprep.subr.bf16.mxu0 0
    %1370 = vmatpush1.bf16.msra.mxu0 %v252
    %1371 = vmatprep.subr.bf16.mxu0 0
    %1372 = vmatpush1.bf16.msra.mxu0 0
    %1373 = vmatprep.subr.bf16.mxu0 0
    %1374 = vmatpush1.bf16.msra.mxu0 0
    %1375 = vmatprep.subr.bf16.mxu0 0
    %1376 = vmatpush1.bf16.msra.mxu0 0
    %1377 = vmatprep.subr.bf16.mxu0 0
    %1378 = vmatpush1.bf16.msra.mxu0 0
    %1379 = vmatprep.subr.bf16.mxu0 0
    %1380 = vmatpush1.bf16.msra.mxu0 0
    %1381 = vmatprep.subr.bf16.mxu0 0
    %1382 = vmatpush1.bf16.msra.mxu0 0
    %1383 = vmatprep.subr.bf16.mxu0 0
    %1384 = vmatpush1.bf16.msra.mxu0 0
    %1385 = vmatprep.subr.bf16.mxu0 0
    %1386 = vmatpush1.bf16.msra.mxu0 0
    %1387 = vmatprep.subr.bf16.mxu0 0
    %1388 = vmatpush1.bf16.msra.mxu0 0
    %1389 = vmatprep.subr.bf16.mxu0 0
    %1390 = vmatpush1.bf16.msra.mxu0 0
    %1391 = vmatprep.subr.bf16.mxu0 0
    %1392 = vmatpush1.bf16.msra.mxu0 0
    %1393 = vmatprep.subr.bf16.mxu0 0
    %1394 = vmatpush1.bf16.msra.mxu0 0
    %1395 = vmatprep.subr.bf16.mxu0 0
    %1396 = vmatpush1.bf16.msra.mxu0 0
    %1397 = vmatprep.subr.bf16.mxu0 0
    %1398 = vmatpush1.bf16.msra.mxu0 0
    %1399 = vmatprep.mubr.bf16.mxu0 0
    %1400 = vmatmul.mubr.bf16.gmra.mrb[0].mxu0 %v1365
    %v1401 = vpop.f32.mrb[0].mxu0
    %v1402 = vadd.f32 %v156, %v1401
    %v1403 = vpop.f32.mrb[0].mxu0
    %v1404 = vpop.f32.mrb[0].mxu0
    %v1405 = vpop.f32.mrb[0].mxu0
    %1406 = vdwg.mxu0
    %v1407 = vpack.c.bf16 %v1294, %v1294
    %1409 = vrot.lane.b32.xlu0 %v1407, 64
    %v1410 = vpop.permute.xlu0 %1409
    %v1412 = vsel %vm170, %v1410, 0
    %1414 = vmatprep.subr.bf16.mxu0 0
    %1415 = vmatpush1.bf16.msra.mxu0 %v306
    %1416 = vmatprep.subr.bf16.mxu0 0
    %1417 = vmatpush1.bf16.msra.mxu0 %v307
    %1418 = vmatprep.subr.bf16.mxu0 0
    %1419 = vmatpush1.bf16.msra.mxu0 0
    %1420 = vmatprep.subr.bf16.mxu0 0
    %1421 = vmatpush1.bf16.msra.mxu0 0
    %1422 = vmatprep.subr.bf16.mxu0 0
    %1423 = vmatpush1.bf16.msra.mxu0 0
    %1424 = vmatprep.subr.bf16.mxu0 0
    %1425 = vmatpush1.bf16.msra.mxu0 0
    %1426 = vmatprep.subr.bf16.mxu0 0
    %1427 = vmatpush1.bf16.msra.mxu0 0
    %1428 = vmatprep.subr.bf16.mxu0 0
    %1429 = vmatpush1.bf16.msra.mxu0 0
    %1430 = vmatprep.subr.bf16.mxu0 0
    %1431 = vmatpush1.bf16.msra.mxu0 0
    %1432 = vmatprep.subr.bf16.mxu0 0
    %1433 = vmatpush1.bf16.msra.mxu0 0
    %1434 = vmatprep.subr.bf16.mxu0 0
    %1435 = vmatpush1.bf16.msra.mxu0 0
    %1436 = vmatprep.subr.bf16.mxu0 0
    %1437 = vmatpush1.bf16.msra.mxu0 0
    %1438 = vmatprep.subr.bf16.mxu0 0
    %1439 = vmatpush1.bf16.msra.mxu0 0
    %1440 = vmatprep.subr.bf16.mxu0 0
    %1441 = vmatpush1.bf16.msra.mxu0 0
    %1442 = vmatprep.subr.bf16.mxu0 0
    %1443 = vmatpush1.bf16.msra.mxu0 0
    %1444 = vmatprep.subr.bf16.mxu0 0
    %1445 = vmatpush1.bf16.msra.mxu0 0
    %1446 = vmatprep.mubr.bf16.mxu0 0
    %1447 = vmatmul.mubr.bf16.gmra.mrb[0].mxu0 %v1412
    %v1448 = vpop.f32.mrb[0].mxu0
    %v1449 = vadd.f32 0.0, %v1448
    %v1450 = vpop.f32.mrb[0].mxu0
    %v1451 = vpop.f32.mrb[0].mxu0
    %v1452 = vpop.f32.mrb[0].mxu0
    %1453 = vdwg.mxu0
    %v1454 = vadd.f32 %v1402, %v1449
    %v1455 = vxor.u32 %v1454, 2147483648
    %v1456 = vmul.f32 %v1455, 1.442695
    %v1457 = vpow.pop %v1456
    %v1458 = vadd.f32 %v1457, 1.0
    %v1459 = vrcp.pop %v1458
    %v1460 = vmul.f32 1.0, %v1459
    %v1461 = vtanh.pop %v1454
    %v1462 = vmul.f32 %v1460, %v1288
    %1464 = vrot.lane.b32.xlu0 %v1461, 32
    %v1465 = vpop.permute.xlu0 %1464
    %v1467 = vmul.f32 %v1460, %v1465
    %1469 = vrot.lane.b32.xlu0 %v1467, 32
    %v1470 = vpop.permute.xlu0 %1469
    %v1472 = vadd.f32 %v1462, %v1470
    %v1473 = vtanh.pop %v1472
    %1475 = vrot.lane.b32.xlu0 %v1473, 32
    %v1476 = vpop.permute.xlu0 %1475
    %v1478 = vmul.f32 %v1460, %v1476
    %1479 = vmatprep.subr.bf16.mxu0 0
    %1480 = vmatpush1.bf16.msra.mxu0 %v166
    %1481 = vmatprep.subr.bf16.mxu0 0
    %1482 = vmatpush1.bf16.msra.mxu0 %v167
    %1483 = vmatprep.subr.bf16.mxu0 0
    %1484 = vmatpush1.bf16.msra.mxu0 0
    %1485 = vmatprep.subr.bf16.mxu0 0
    %1486 = vmatpush1.bf16.msra.mxu0 0
    %1487 = vmatprep.subr.bf16.mxu0 0
    %1488 = vmatpush1.bf16.msra.mxu0 0
    %1489 = vmatprep.subr.bf16.mxu0 0
    %1490 = vmatpush1.bf16.msra.mxu0 0
    %1491 = vmatprep.subr.bf16.mxu0 0
    %1492 = vmatpush1.bf16.msra.mxu0 0
    %1493 = vmatprep.subr.bf16.mxu0 0
    %1494 = vmatpush1.bf16.msra.mxu0 0
    %1495 = vmatprep.subr.bf16.mxu0 0
    %1496 = vmatpush1.bf16.msra.mxu0 0
    %1497 = vmatprep.subr.bf16.mxu0 0
    %1498 = vmatpush1.bf16.msra.mxu0 0
    %1499 = vmatprep.subr.bf16.mxu0 0
    %1500 = vmatpush1.bf16.msra.mxu0 0
    %1501 = vmatprep.subr.bf16.mxu0 0
    %1502 = vmatpush1.bf16.msra.mxu0 0
    %1503 = vmatprep.subr.bf16.mxu0 0
    %1504 = vmatpush1.bf16.msra.mxu0 0
    %1505 = vmatprep.subr.bf16.mxu0 0
    %1506 = vmatpush1.bf16.msra.mxu0 0
    %1507 = vmatprep.subr.bf16.mxu0 0
    %1508 = vmatpush1.bf16.msra.mxu0 0
    %1509 = vmatprep.subr.bf16.mxu0 0
    %1510 = vmatpush1.bf16.msra.mxu0 0
    %1511 = vmatprep.mubr.bf16.mxu0 0
    %1512 = vmatmul.mubr.bf16.gmra.mrb[0].mxu0 %v1365
    %v1513 = vpop.f32.mrb[0].mxu0
    %v1514 = vadd.f32 0.0, %v1513
    %v1515 = vpop.f32.mrb[0].mxu0
    %v1516 = vpop.f32.mrb[0].mxu0
    %v1517 = vpop.f32.mrb[0].mxu0
    %1518 = vdwg.mxu0
    %v1519 = vadd.f32 %v149, %v1514
    %v1520 = vxor.u32 %v1519, 2147483648
    %v1521 = vmul.f32 %v1520, 1.442695
    %v1522 = vpow.pop %v1521
    %v1523 = vadd.f32 %v1522, 1.0
    %v1524 = vrcp.pop %v1523
    %v1525 = vmul.f32 1.0, %v1524
    %v1526 = vtanh.pop %v1519
    %v1527 = vmul.f32 %v1525, %v1353
    %1529 = vrot.lane.b32.xlu0 %v1526, 32
    %v1530 = vpop.permute.xlu0 %1529
    %v1532 = vmul.f32 %v1525, %v1530
    %1534 = vrot.lane.b32.xlu0 %v1532, 32
    %v1535 = vpop.permute.xlu0 %1534
    %v1537 = vadd.f32 %v1527, %v1535
    %v1538 = vtanh.pop %v1537
    %1540 = vrot.lane.b32.xlu0 %v1538, 32
    %v1541 = vpop.permute.xlu0 %1540
    %v1543 = vmul.f32 %v1525, %v1541
    %v1544 = vpack.c.bf16 %v1543, %v1543
    %1546 = vrot.lane.b32.xlu0 %v1544, 64
    %v1547 = vpop.permute.xlu0 %1546
    %v1549 = vsel %vm170, %v1547, 0
    %1551 = vmatprep.subr.bf16.mxu0 0
    %1552 = vmatpush1.bf16.msra.mxu0 %v251
    %1553 = vmatprep.subr.bf16.mxu0 0
    %1554 = vmatpush1.bf16.msra.mxu0 %v252
    %1555 = vmatprep.subr.bf16.mxu0 0
    %1556 = vmatpush1.bf16.msra.mxu0 0
    %1557 = vmatprep.subr.bf16.mxu0 0
    %1558 = vmatpush1.bf16.msra.mxu0 0
    %1559 = vmatprep.subr.bf16.mxu0 0
    %1560 = vmatpush1.bf16.msra.mxu0 0
    %1561 = vmatprep.subr.bf16.mxu0 0
    %1562 = vmatpush1.bf16.msra.mxu0 0
    %1563 = vmatprep.subr.bf16.mxu0 0
    %1564 = vmatpush1.bf16.msra.mxu0 0
    %1565 = vmatprep.subr.bf16.mxu0 0
    %1566 = vmatpush1.bf16.msra.mxu0 0
    %1567 = vmatprep.subr.bf16.mxu0 0
    %1568 = vmatpush1.bf16.msra.mxu0 0
    %1569 = vmatprep.subr.bf16.mxu0 0
    %1570 = vmatpush1.bf16.msra.mxu0 0
    %1571 = vmatprep.subr.bf16.mxu0 0
    %1572 = vmatpush1.bf16.msra.mxu0 0
    %1573 = vmatprep.subr.bf16.mxu0 0
    %1574 = vmatpush1.bf16.msra.mxu0 0
    %1575 = vmatprep.subr.bf16.mxu0 0
    %1576 = vmatpush1.bf16.msra.mxu0 0
    %1577 = vmatprep.subr.bf16.mxu0 0
    %1578 = vmatpush1.bf16.msra.mxu0 0
    %1579 = vmatprep.subr.bf16.mxu0 0
    %1580 = vmatpush1.bf16.msra.mxu0 0
    %1581 = vmatprep.subr.bf16.mxu0 0
    %1582 = vmatpush1.bf16.msra.mxu0 0
    %1583 = vmatprep.mubr.bf16.mxu0 0
    %1584 = vmatmul.mubr.bf16.gmra.mrb[0].mxu0 %v1549
    %v1585 = vpop.f32.mrb[0].mxu0
    %v1586 = vadd.f32 %v156, %v1585
    %v1587 = vpop.f32.mrb[0].mxu0
    %v1588 = vpop.f32.mrb[0].mxu0
    %v1589 = vpop.f32.mrb[0].mxu0
    %1590 = vdwg.mxu0
    %v1591 = vpack.c.bf16 %v1478, %v1478
    %1593 = vrot.lane.b32.xlu0 %v1591, 64
    %v1594 = vpop.permute.xlu0 %1593
    %v1596 = vsel %vm170, %v1594, 0
    %1598 = vmatprep.subr.bf16.mxu0 0
    %1599 = vmatpush1.bf16.msra.mxu0 %v306
    %1600 = vmatprep.subr.bf16.mxu0 0
    %1601 = vmatpush1.bf16.msra.mxu0 %v307
    %1602 = vmatprep.subr.bf16.mxu0 0
    %1603 = vmatpush1.bf16.msra.mxu0 0
    %1604 = vmatprep.subr.bf16.mxu0 0
    %1605 = vmatpush1.bf16.msra.mxu0 0
    %1606 = vmatprep.subr.bf16.mxu0 0
    %1607 = vmatpush1.bf16.msra.mxu0 0
    %1608 = vmatprep.subr.bf16.mxu0 0
    %1609 = vmatpush1.bf16.msra.mxu0 0
    %1610 = vmatprep.subr.bf16.mxu0 0
    %1611 = vmatpush1.bf16.msra.mxu0 0
    %1612 = vmatprep.subr.bf16.mxu0 0
    %1613 = vmatpush1.bf16.msra.mxu0 0
    %1614 = vmatprep.subr.bf16.mxu0 0
    %1615 = vmatpush1.bf16.msra.mxu0 0
    %1616 = vmatprep.subr.bf16.mxu0 0
    %1617 = vmatpush1.bf16.msra.mxu0 0
    %1618 = vmatprep.subr.bf16.mxu0 0
    %1619 = vmatpush1.bf16.msra.mxu0 0
    %1620 = vmatprep.subr.bf16.mxu0 0
    %1621 = vmatpush1.bf16.msra.mxu0 0
    %1622 = vmatprep.subr.bf16.mxu0 0
    %1623 = vmatpush1.bf16.msra.mxu0 0
    %1624 = vmatprep.subr.bf16.mxu0 0
    %1625 = vmatpush1.bf16.msra.mxu0 0
    %1626 = vmatprep.subr.bf16.mxu0 0
    %1627 = vmatpush1.bf16.msra.mxu0 0
    %1628 = vmatprep.subr.bf16.mxu0 0
    %1629 = vmatpush1.bf16.msra.mxu0 0
    %1630 = vmatprep.mubr.bf16.mxu0 0
    %1631 = vmatmul.mubr.bf16.gmra.mrb[0].mxu0 %v1596
    %v1632 = vpop.f32.mrb[0].mxu0
    %v1633 = vadd.f32 0.0, %v1632
    %v1634 = vpop.f32.mrb[0].mxu0
    %v1635 = vpop.f32.mrb[0].mxu0
    %v1636 = vpop.f32.mrb[0].mxu0
    %1637 = vdwg.mxu0
    %v1638 = vadd.f32 %v1586, %v1633
    %v1639 = vxor.u32 %v1638, 2147483648
    %v1640 = vmul.f32 %v1639, 1.442695
    %v1641 = vpow.pop %v1640
    %v1642 = vadd.f32 %v1641, 1.0
    %v1643 = vrcp.pop %v1642
    %v1644 = vmul.f32 1.0, %v1643
    %v1645 = vtanh.pop %v1638
    %v1646 = vmul.f32 %v1644, %v1472
    %1648 = vrot.lane.b32.xlu0 %v1645, 32
    %v1649 = vpop.permute.xlu0 %1648
    %v1651 = vmul.f32 %v1644, %v1649
    %1653 = vrot.lane.b32.xlu0 %v1651, 32
    %v1654 = vpop.permute.xlu0 %1653
    %v1656 = vadd.f32 %v1646, %v1654
    %v1657 = vtanh.pop %v1656
    %1659 = vrot.lane.b32.xlu0 %v1657, 32
    %v1660 = vpop.permute.xlu0 %1659
    %v1662 = vmul.f32 %v1644, %v1660
    %1664 = vrot.lane.b32.xlu0 %v374, 64
    %v1665 = vpop.permute.xlu0 %1664
    %1668 = vrot.lane.b32.xlu0 %v558, 96
    %v1669 = vpop.permute.xlu0 %1668
    %1672 = vrot.lane.b32.xlu0 %v926, 32
    %v1673 = vpop.permute.xlu0 %1672
    %1676 = vrot.lane.b32.xlu0 %v1110, 64
    %v1677 = vpop.permute.xlu0 %1676
    %1680 = vrot.lane.b32.xlu0 %v1294, 96
    %v1681 = vpop.permute.xlu0 %1680
    %1684 = vrot.lane.b32.xlu0 %v1662, 32
    %v1685 = vpop.permute.xlu0 %1684
    %v1687 = vsel %vm170, %v1665, %v1669
    %vm1688 = vcmask 523264
    %v1689 = vsel %vm1688, %v1687, %v742
    %vm1690 = vcmask 785408
    %v1691 = vsel %vm1690, %v1689, %v1673
    %v1692 = vsel %vm170, %v1677, %v1681
    %v1693 = vsel %vm1688, %v1692, %v1478
    %v1694 = vsel %vm1690, %v1693, %v1685
    %v1695 = vpack.c.bf16 %v1691, %v1691
    %v1696 = vpack.c.bf16 %v1694, %v1694
    %v1697 = vld [vmem:[%s7] sm:$0xf]
    %v1698 = vld [vmem:[%s7 + $0x4] sm:$0xf]
    %v1699 = vld [vmem:[%s7 + $0x8] sm:$0xf]
    %v1700 = vld [vmem:[%s7 + $0xc] sm:$0xf]
    %v1701 = vld [vmem:[%s7 + $0x10] sm:$0xf]
    %v1702 = vld [vmem:[%s7 + $0x14] sm:$0xf]
    %v1703 = vld [vmem:[%s7 + $0x18] sm:$0xf]
    %v1704 = vld [vmem:[%s7 + $0x1c] sm:$0xf]
    %v1705 = vld [vmem:[%s7 + $0x20] sm:$0xf]
    %v1706 = vld [vmem:[%s7 + $0x24] sm:$0xf]
    %v1707 = vld [vmem:[%s7 + $0x28] sm:$0xf]
    %v1708 = vld [vmem:[%s7 + $0x2c] sm:$0xf]
    %v1709 = vld [vmem:[%s7 + $0x30] sm:$0xf]
    %v1710 = vld [vmem:[%s7 + $0x34] sm:$0xf]
    %v1711 = vld [vmem:[%s7 + $0x38] sm:$0xf]
    %v1712 = vld [vmem:[%s7 + $0x3c] sm:$0xf]
    %v1713 = vld [vmem:[%s7 + $0x40] sm:$0xf]
    %v1714 = vld [vmem:[%s7 + $0x44] sm:$0xf]
    %v1715 = vld [vmem:[%s7 + $0x48] sm:$0xf]
    %v1716 = vld [vmem:[%s7 + $0x4c] sm:$0xf]
    %v1717 = vld [vmem:[%s7 + $0x50] sm:$0xf]
    %v1718 = vld [vmem:[%s7 + $0x54] sm:$0xf]
    %v1719 = vld [vmem:[%s7 + $0x58] sm:$0xf]
    %v1720 = vld [vmem:[%s7 + $0x5c] sm:$0xf]
    %v1721 = vld [vmem:[%s7 + $0x60] sm:$0xf]
    %v1722 = vld [vmem:[%s7 + $0x64] sm:$0xf]
    %v1723 = vld [vmem:[%s7 + $0x68] sm:$0xf]
    %v1724 = vld [vmem:[%s7 + $0x6c] sm:$0xf]
    %v1725 = vld [vmem:[%s7 + $0x70] sm:$0xf]
    %v1726 = vld [vmem:[%s7 + $0x74] sm:$0xf]
    %v1727 = vld [vmem:[%s7 + $0x78] sm:$0xf]
    %v1728 = vld [vmem:[%s7 + $0x7c] sm:$0xf]
    %v1729 = vld [vmem:[%s8] sm:$0x1]
    %v1731 = vlaneseq
    %v1732 = vshrl.u32 %v1731, 7
    %v1733 = vsub.s32 0, %v1732
    %v1734 = vrot.slane %v1729, %v1733
    %v1768 = vunpack.c.l.b16 %v1697
    %v1769 = vunpack.c.l.b16 %v1698
    %v1770 = vunpack.c.l.b16 %v1699
    %v1771 = vunpack.c.l.b16 %v1700
    %v1772 = vunpack.c.l.b16 %v1701
    %v1773 = vunpack.c.l.b16 %v1702
    %v1774 = vunpack.c.l.b16 %v1703
    %v1775 = vunpack.c.l.b16 %v1704
    %v1776 = vunpack.c.l.b16 %v1705
    %v1777 = vunpack.c.l.b16 %v1706
    %v1778 = vunpack.c.l.b16 %v1707
    %v1779 = vunpack.c.l.b16 %v1708
    %v1780 = vunpack.c.l.b16 %v1709
    %v1781 = vunpack.c.l.b16 %v1710
    %v1782 = vunpack.c.l.b16 %v1711
    %v1783 = vunpack.c.l.b16 %v1712
    %v1784 = vunpack.c.l.b16 %v1713
    %v1785 = vunpack.c.l.b16 %v1714
    %v1786 = vunpack.c.l.b16 %v1715
    %v1787 = vunpack.c.l.b16 %v1716
    %v1788 = vunpack.c.l.b16 %v1717
    %v1789 = vunpack.c.l.b16 %v1718
    %v1790 = vunpack.c.l.b16 %v1719
    %v1791 = vunpack.c.l.b16 %v1720
    %v1792 = vunpack.c.l.b16 %v1721
    %v1793 = vunpack.c.l.b16 %v1722
    %v1794 = vunpack.c.l.b16 %v1723
    %v1795 = vunpack.c.l.b16 %v1724
    %v1796 = vunpack.c.l.b16 %v1725
    %v1797 = vunpack.c.l.b16 %v1726
    %v1798 = vunpack.c.l.b16 %v1727
    %v1799 = vunpack.c.l.b16 %v1728
    %v1800 = vpack.c.b16 %v1769, %v1768
    %v1801 = vpack.c.b16 %v1771, %v1770
    %v1802 = vpack.c.b16 %v1773, %v1772
    %v1803 = vpack.c.b16 %v1775, %v1774
    %v1804 = vpack.c.b16 %v1777, %v1776
    %v1805 = vpack.c.b16 %v1779, %v1778
    %v1806 = vpack.c.b16 %v1781, %v1780
    %v1807 = vpack.c.b16 %v1783, %v1782
    %v1808 = vpack.c.b16 %v1785, %v1784
    %v1809 = vpack.c.b16 %v1787, %v1786
    %v1810 = vpack.c.b16 %v1789, %v1788
    %v1811 = vpack.c.b16 %v1791, %v1790
    %v1812 = vpack.c.b16 %v1793, %v1792
    %v1813 = vpack.c.b16 %v1795, %v1794
    %v1814 = vpack.c.b16 %v1797, %v1796
    %v1815 = vpack.c.b16 %v1799, %v1798
    %1832 = vmatprep.subr.bf16.mxu0 0
    %1833 = vmatpush1.bf16.msra.mxu0 %v1800
    %1834 = vmatprep.subr.bf16.mxu0 0
    %1835 = vmatpush1.bf16.msra.mxu0 %v1801
    %1836 = vmatprep.subr.bf16.mxu0 0
    %1837 = vmatpush1.bf16.msra.mxu0 %v1802
    %1838 = vmatprep.subr.bf16.mxu0 0
    %1839 = vmatpush1.bf16.msra.mxu0 %v1803
    %1840 = vmatprep.subr.bf16.mxu0 0
    %1841 = vmatpush1.bf16.msra.mxu0 %v1804
    %1842 = vmatprep.subr.bf16.mxu0 0
    %1843 = vmatpush1.bf16.msra.mxu0 %v1805
    %1844 = vmatprep.subr.bf16.mxu0 0
    %1845 = vmatpush1.bf16.msra.mxu0 %v1806
    %1846 = vmatprep.subr.bf16.mxu0 0
    %1847 = vmatpush1.bf16.msra.mxu0 %v1807
    %1848 = vmatprep.subr.bf16.mxu0 0
    %1849 = vmatpush1.bf16.msra.mxu0 %v1808
    %1850 = vmatprep.subr.bf16.mxu0 0
    %1851 = vmatpush1.bf16.msra.mxu0 %v1809
    %1852 = vmatprep.subr.bf16.mxu0 0
    %1853 = vmatpush1.bf16.msra.mxu0 %v1810
    %1854 = vmatprep.subr.bf16.mxu0 0
    %1855 = vmatpush1.bf16.msra.mxu0 %v1811
    %1856 = vmatprep.subr.bf16.mxu0 0
    %1857 = vmatpush1.bf16.msra.mxu0 %v1812
    %1858 = vmatprep.subr.bf16.mxu0 0
    %1859 = vmatpush1.bf16.msra.mxu0 %v1813
    %1860 = vmatprep.subr.bf16.mxu0 0
    %1861 = vmatpush1.bf16.msra.mxu0 %v1814
    %1862 = vmatprep.subr.bf16.mxu0 0
    %1863 = vmatpush1.bf16.msra.mxu0 %v1815
    %1864 = vmatprep.mubr.bf16.mxu0 %v1696
    %1865 = vmatmul.mubr.bf16.gmra.mrb[0].mxu0 %v1695
    %v1866 = vpop.f32.mrb[0].mxu0
    %v1867 = vadd.f32 %v1734, %v1866
    %v1868 = vpop.f32.mrb[0].mxu0
    %v1869 = vpop.f32.mrb[0].mxu0
    %v1870 = vpop.f32.mrb[0].mxu0
    %1871 = vdwg.mxu0
    %vm1872 = vcmask 80896
    %1873 = vst.msk [vmem:[#allocation2] sm:$0xff] %vm1872, %v1867
    // Predicated region
    $region38: #{tpu_custom_call.1} parent=1 // pred_check
      _
    $region39: #{tpu_custom_call.1} parent=1 // pred_check_branch
      %1875 = sbr.rel (0) target = $region41
    $region40: #{tpu_custom_call.1} parent=1 // pred_region
      %s1877 = ssub.s32 128, 128
      %1878 = vsyncadd [#allocation3], %s1877
      %s1880 = sshll.u32 [#allocation2], 4
      %s1881 = int_to_ptr.vmem [resolvable:$true] %s1880
      %1883 = dma.vmem_to_hbm [thread:$0]  %s1881, 128, %s9, [#allocation3]
    $region41: #{tpu_custom_call.1} parent=1 // pred_fallthru
      _
    // Predicated region
    $region42: #{tpu_custom_call.1} parent=1 // pred_check
      _
    $region43: #{tpu_custom_call.1} parent=1 // pred_check_branch
      %1885 = sbr.rel (0) target = $region45
    $region44: #{tpu_custom_call.1} parent=1 // pred_region
      %1886 = dma.done [#allocation3], 128
    $region45: #{tpu_custom_call.1} parent=1 // pred_fallthru
      _
    %1887 = vsyncpa [#allocation3], 1

</llo_original>
